<compile_context>
chip_gen: v5e
topology: v5e:2x2
jax: 0.10.0
libtpu: 0.0.40
codegen_flags: <defaults>
</compile_context>

<pallas_src>
import functools

import jax
import jax.numpy as jnp
from jax.experimental import pallas as pl
from jax.experimental.pallas import tpu as pltpu

LANE = 128       # feature / hidden channels padded to a full lane width
NODE_PAD = 128   # node count padded to full MXU depth (and sublane multiple)
NUM_LAYERS = 4
EPS_GIN = 0.0
BN_EPS = 1e-5


# ----------------------------------------------------------------------------- kernel
def gnn_fused_kernel(a_ref, h_ref, w1_ref, c1_ref, w2_ref, c2_ref, out_ref,
                     *, num_layers):
    """All GIN layers fused; h stays resident in VMEM/vregs across layers.

    Per grid step (one graph):
      a_ref  : (NODE_PAD, NODE_PAD) f32   augmented adjacency (1+eps on real diag)
      h_ref  : (NODE_PAD, LANE)     f32   node features, channel-padded
      w1_ref : (L, LANE, LANE)      bf16  Linear1 weights with inner-BN folded in
      c1_ref : (L, 1, LANE)         f32   folded Linear1 bias + inner-BN shift
      w2_ref : (L, LANE, LANE)      bf16  Linear2 weights with outer-BN folded in
      c2_ref : (L, 1, LANE)         f32   folded Linear2 bias + outer-BN shift
      out_ref: (NODE_PAD, LANE)     f32   final node embeddings (padded)
    """
    a = a_ref[...]                            # f32, loaded once for all layers
    h = h_ref[...]                            # f32

    for layer in range(num_layers):           # statically unrolled (4 layers)
        # GIN aggregation incl. (1+eps)*self via the diagonal.  f32 MXU pass so
        # integer edge multiplicities / summed-neighbour values stay exact.
        agg = jnp.dot(a, h, preferred_element_type=jnp.float32)
        # Linear1 (+ folded inner BN) + ReLU — bf16 MXU inputs, f32 accumulate.
        z = jnp.dot(agg.astype(jnp.bfloat16), w1_ref[layer],
                    preferred_element_type=jnp.float32)
        z = jnp.maximum(z + c1_ref[layer], 0.0)
        # Linear2 (+ folded outer BN).
        z = jnp.dot(z.astype(jnp.bfloat16), w2_ref[layer],
                    preferred_element_type=jnp.float32)
        z = z + c2_ref[layer]
        if layer != num_layers - 1:           # last layer: no ReLU (matches module)
            z = jnp.maximum(z, 0.0)
        h = z

    out_ref[...] = h                          # single lane-dense (128,128) f32 store


def gnn_fused_call(a_b, h0_b, w1s, c1s, w2s, c2s):
    """Batched fused forward: grid=(num_graphs,), weights resident across steps."""
    num_layers = w1s.shape[0]
    batch, npad, _ = a_b.shape
    kernel = functools.partial(gnn_fused_kernel, num_layers=num_layers)

    flops = batch * num_layers * (2 * npad * npad * LANE + 2 * 2 * npad * LANE * LANE)
    bytes_accessed = sum(int(t.size) * t.dtype.itemsize
                         for t in (a_b, h0_b, w1s, c1s, w2s, c2s))
    bytes_accessed += batch * npad * LANE * 4  # output

    grid_spec = pltpu.PrefetchScalarGridSpec(
        num_scalar_prefetch=0,
        grid=(batch,),
        in_specs=[
            # per-graph blocks (leading graph axis squeezed out of the kernel ref)
            pl.BlockSpec((None, npad, npad), lambda b: (b, 0, 0)),
            pl.BlockSpec((None, npad, LANE), lambda b: (b, 0, 0)),
            # stacked per-layer weights: same block for every grid step -> stay in VMEM
            pl.BlockSpec((num_layers, LANE, LANE), lambda b: (0, 0, 0)),
            pl.BlockSpec((num_layers, 1, LANE), lambda b: (0, 0, 0)),
            pl.BlockSpec((num_layers, LANE, LANE), lambda b: (0, 0, 0)),
            pl.BlockSpec((num_layers, 1, LANE), lambda b: (0, 0, 0)),
        ],
        out_specs=pl.BlockSpec((None, npad, LANE), lambda b: (b, 0, 0)),
    )

    return pl.pallas_call(
        kernel,
        out_shape=jax.ShapeDtypeStruct((batch, npad, LANE), jnp.float32),
        grid_spec=grid_spec,
        compiler_params=pltpu.CompilerParams(
            dimension_semantics=("parallel",),      # graphs are independent (v7x megacore)
            vmem_limit_bytes=16 * 1024 * 1024),     # explicit, safe on v5e/v6e/v7x
        cost_estimate=pl.CostEstimate(flops=flops, transcendentals=0,
                                      bytes_accessed=bytes_accessed),
    )(a_b, h0_b, w1s, c1s, w2s, c2s)


# ----------------------------------------------------------------------------- host glue
def build_adjacency_padded(edge_index, num_nodes, eps=EPS_GIN):
    """A_aug[dst, src] = #edges(src->dst); plus (1+eps) on the real diagonal.

    Padded rows/cols (>= num_nodes) are all-zero so padded nodes never leak
    into real nodes.
    """
    src, dst = edge_index[0], edge_index[1]
    adj = jnp.zeros((NODE_PAD, NODE_PAD), jnp.float32).at[dst, src].add(1.0)
    diag = (jnp.arange(NODE_PAD) < num_nodes).astype(jnp.float32) * (1.0 + eps)
    return adj + jnp.diag(diag)


def pad_features(x):
    n, f = x.shape
    return jnp.zeros((NODE_PAD, LANE), jnp.float32).at[:n, :f].set(
        x.astype(jnp.float32))


def fold_bn(gamma, beta, running_mean, running_var, eps=BN_EPS):
    scale = gamma / jnp.sqrt(running_var + eps)
    shift = beta - running_mean * scale
    return scale, shift


def init_params(key, num_features, hidden_dim, num_layers=NUM_LAYERS):
    """Deterministic synthetic parameters matching GNN_node.__init__ shapes."""
    params = []
    for layer in range(num_layers):
        in_dim = num_features if layer == 0 else hidden_dim
        keys = jax.random.split(key, 13)
        key = keys[0]
        k1, k2, k3, k4, k5, k6, k7, k8, k9, k10, k11, k12 = keys[1:]
        # Linear weights stored already transposed: (in, out), so y = x @ W + b.
        w1 = jax.random.normal(k1, (in_dim, hidden_dim), jnp.float32) / jnp.sqrt(in_dim)
        b1 = 0.01 * jax.random.normal(k2, (hidden_dim,), jnp.float32)
        w2 = jax.random.normal(k3, (hidden_dim, hidden_dim), jnp.float32) / jnp.sqrt(hidden_dim)
        b2 = 0.01 * jax.random.normal(k4, (hidden_dim,), jnp.float32)
        # Inner (inside GIN nn) and outer BatchNorm1d — eval mode, with
        # non-trivial affine params AND non-trivial running statistics.
        g1 = 1.0 + 0.1 * jax.random.normal(k5, (hidden_dim,), jnp.float32)
        be1 = 0.1 * jax.random.normal(k6, (hidden_dim,), jnp.float32)
        g2 = 1.0 + 0.1 * jax.random.normal(k7, (hidden_dim,), jnp.float32)
        be2 = 0.1 * jax.random.normal(k8, (hidden_dim,), jnp.float32)
        rm1 = 0.05 * jax.random.normal(k9, (hidden_dim,), jnp.float32)
        rv1 = 1.0 + 0.1 * jnp.abs(jax.random.normal(k10, (hidden_dim,), jnp.float32))
        rm2 = 0.05 * jax.random.normal(k11, (hidden_dim,), jnp.float32)
        rv2 = 1.0 + 0.1 * jnp.abs(jax.random.normal(k12, (hidden_dim,), jnp.float32))
        params.append(dict(w1=w1, b1=b1, g1=g1, be1=be1, rm1=rm1, rv1=rv1,
                           w2=w2, b2=b2, g2=g2, be2=be2, rm2=rm2, rv2=rv2))
    return params


def pack_params(params, hidden_dim):
    """Fold bias + BN (using the stored running stats) into the weights, pad
    channels to LANE, stack layers.  Done ONCE at setup, not per call."""
    w1s, c1s, w2s, c2s = [], [], [], []
    for p in params:
        s1, t1 = fold_bn(p["g1"], p["be1"], p["rm1"], p["rv1"])
        s2, t2 = fold_bn(p["g2"], p["be2"], p["rm2"], p["rv2"])
        w1f = p["w1"] * s1[None, :]              # (in, H)
        c1 = p["b1"] * s1 + t1                   # (H,)
        w2f = p["w2"] * s2[None, :]              # (H, H)
        c2 = p["b2"] * s2 + t2                   # (H,)
        in_dim = w1f.shape[0]
        w1p = jnp.zeros((LANE, LANE), jnp.float32).at[:in_dim, :hidden_dim].set(w1f)
        w2p = jnp.zeros((LANE, LANE), jnp.float32).at[:hidden_dim, :hidden_dim].set(w2f)
        c1p = jnp.zeros((1, LANE), jnp.float32).at[0, :hidden_dim].set(c1)
        c2p = jnp.zeros((1, LANE), jnp.float32).at[0, :hidden_dim].set(c2)
        w1s.append(w1p); c1s.append(c1p); w2s.append(w2p); c2s.append(c2p)
    return (jnp.stack(w1s).astype(jnp.bfloat16),
            jnp.stack(c1s),
            jnp.stack(w2s).astype(jnp.bfloat16),
            jnp.stack(c2s))


def make_gnn_node_forward(params, hidden_dim):
    """Returns (single-graph forward, batched forward); glue is fully jitted and
    weight packing is hoisted out of the per-call path."""
    packed = pack_params(params, hidden_dim)     # once; captured as jit constants

    @jax.jit
    def forward_batched(x_b, edge_index_b):
        """x_b: (B, N, F) f32, edge_index_b: (B, 2, E) int32 -> (B, N, hidden)."""
        n = x_b.shape[1]
        a_b = jax.vmap(lambda ei: build_adjacency_padded(ei, n))(edge_index_b)
        h0_b = jax.vmap(pad_features)(x_b)
        out_padded = gnn_fused_call(a_b, h0_b, *packed)
        return out_padded[:, :n, :hidden_dim]    # slice fused into the same jit

    def forward(x, edge_index):
        """GNN_node.forward for a single graph (eval mode: dropout = identity)."""
        return forward_batched(x[None], edge_index[None])[0]

    return forward, forward_batched


# ----------------------------------------------------------------------------- references
def reference_same_math(a, h0, w1s, c1s, w2s, c2s, hidden_dim, num_nodes):
    """Pure-JAX reference mirroring the kernel math (validates the lowering)."""
    num_layers = w1s.shape[0]
    h = h0
    for layer in range(num_layers):
        agg = jnp.dot(a, h, preferred_element_type=jnp.float32,
                      precision=jax.lax.Precision.HIGHEST)
        z = jnp.dot(agg.astype(jnp.bfloat16), w1s[layer],
                    preferred_element_type=jnp.float32)
        z = jnp.maximum(z + c1s[layer], 0.0)
        z = jnp.dot(z.astype(jnp.bfloat16), w2s[layer],
                    preferred_element_type=jnp.float32)
        z = z + c2s[layer]
        if layer != num_layers - 1:
            z = jnp.maximum(z, 0.0)
        h = z
    return h[:num_nodes, :hidden_dim]


def reference_f32(x, edge_index, params):
    """Full-f32 reference of the original (unfolded) PyTorch eval-mode math."""
    n = x.shape[0]
    src, dst = edge_index[0], edge_index[1]
    h = x.astype(jnp.float32)
    num_layers = len(params)
    for layer, p in enumerate(params):
        msg = jnp.zeros((n, h.shape[1]), jnp.float32).at[dst].add(h[src])
        z = (1.0 + EPS_GIN) * h + msg
        z = jnp.dot(z, p["w1"], precision=jax.lax.Precision.HIGHEST) + p["b1"]
        z = (z - p["rm1"]) / jnp.sqrt(p["rv1"] + BN_EPS) * p["g1"] + p["be1"]
        z = jnp.maximum(z, 0.0)
        z = jnp.dot(z, p["w2"], precision=jax.lax.Precision.HIGHEST) + p["b2"]
        z = (z - p["rm2"]) / jnp.sqrt(p["rv2"] + BN_EPS) * p["g2"] + p["be2"]
        if layer != num_layers - 1:
            z = jnp.maximum(z, 0.0)
        h = z
    return h


# ----------------------------------------------------------------------------- main
if __name__ == "__main__":
    NUM_NODES = 32
    NUM_FEATURES = 16
    HIDDEN_DIM = 32
    BATCH = 2   # two independent graphs -> grid=(2,) 'parallel' axis

    key = jax.random.PRNGKey(0)
    key, kparams = jax.random.split(key)
    params = init_params(kparams, NUM_FEATURES, HIDDEN_DIM, NUM_LAYERS)

    xs, eis = [], []
    for _ in range(BATCH):
        key, kx, ke = jax.random.split(key, 3)
        # data.x : node features
        x = jax.random.normal(kx, (NUM_NODES, NUM_FEATURES), jnp.float32)
        # data.edge_index : ring graph (both directions) + a few extra edges.
        idx = jnp.arange(NUM_NODES)
        ring_src = jnp.concatenate([idx, (idx + 1) % NUM_NODES])
        ring_dst = jnp.concatenate([(idx + 1) % NUM_NODES, idx])
        extra_src = jax.random.randint(ke, (16,), 0, NUM_NODES)
        extra_dst = (extra_src + 7) % NUM_NODES
        ei = jnp.stack([jnp.concatenate([ring_src, extra_src]),
                        jnp.concatenate([ring_dst, extra_dst])]).astype(jnp.int32)
        xs.append(x)
        eis.append(ei)
    x_b = jnp.stack(xs)            # (2, 32, 16)
    ei_b = jnp.stack(eis)          # (2, 2, 80)

    forward, forward_batched = make_gnn_node_forward(params, HIDDEN_DIM)

    # Batched call (grid=(2,), 'parallel' — shards across TCs on v7x).
    out_b = jax.block_until_ready(forward_batched(x_b, ei_b))
    assert out_b.shape == (BATCH, NUM_NODES, HIDDEN_DIM) and out_b.dtype == jnp.float32

    # Single-graph path (the module's forward(data) semantics) must agree.
    out0 = jax.block_until_ready(forward(xs[0], eis[0]))
    assert float(jnp.max(jnp.abs(out0 - out_b[0]))) <= 1e-5

    # Correctness: (1) against a same-math reference, (2) against full-f32 math.
    w1s, c1s, w2s, c2s = pack_params(params, HIDDEN_DIM)
    for g in range(BATCH):
        a = build_adjacency_padded(eis[g], NUM_NODES)
        h0 = pad_features(xs[g])
        ref_same = jax.block_until_ready(
            reference_same_math(a, h0, w1s, c1s, w2s, c2s, HIDDEN_DIM, NUM_NODES))
        ref_f32 = jax.block_until_ready(reference_f32(xs[g], eis[g], params))

        scale_same = float(jnp.max(jnp.abs(ref_same)))
        err_same = float(jnp.max(jnp.abs(out_b[g] - ref_same)))
        assert err_same <= 2e-2 * scale_same + 1e-3, ("same-math", g, err_same, scale_same)

        scale_f32 = float(jnp.max(jnp.abs(ref_f32)))
        err_f32 = float(jnp.max(jnp.abs(out_b[g] - ref_f32)))
        # bf16 MXU inputs in the two linears per layer -> a few % relative error
        # vs the exact f32 PyTorch math is expected and acceptable here.
        assert err_f32 <= 8e-2 * scale_f32 + 5e-2, ("f32", g, err_f32, scale_f32)

    print("KERNEL_OK")
</pallas_src>

<mosaic_0001>
module attributes {stable_mosaic.version = 11 : i64} {
  func.func @gnn_fused_kernel(%arg0: i32, %arg1: memref<1x128x128xf32, #tpu.memory_space<vmem>>, %arg2: memref<1x128x128xf32, #tpu.memory_space<vmem>>, %arg3: memref<4x128x128xbf16, #tpu.memory_space<vmem>>, %arg4: memref<4x1x128xf32, #tpu.memory_space<vmem>>, %arg5: memref<4x128x128xbf16, #tpu.memory_space<vmem>>, %arg6: memref<4x1x128xf32, #tpu.memory_space<vmem>>, %arg7: memref<1x128x128xf32, #tpu.memory_space<vmem>>) attributes {dimension_semantics = [#tpu.dimension_semantics<parallel>], iteration_bounds = array<i64: 2>, scalar_prefetch = 0 : i64, scratch_operands = 0 : i64, tpu.core_type = #tpu.core_type<tc>, window_params = [{transform_indices = @transform_0, window_bounds = array<i64: 1, 128, 128>}, {transform_indices = @transform_1, window_bounds = array<i64: 1, 128, 128>}, {pipeline_mode = #tpu.pipeline_mode<synchronous>, transform_indices = @transform_2, window_bounds = array<i64: 4, 128, 128>}, {pipeline_mode = #tpu.pipeline_mode<synchronous>, transform_indices = @transform_3, window_bounds = array<i64: 4, 1, 128>}, {pipeline_mode = #tpu.pipeline_mode<synchronous>, transform_indices = @transform_4, window_bounds = array<i64: 4, 128, 128>}, {pipeline_mode = #tpu.pipeline_mode<synchronous>, transform_indices = @transform_5, window_bounds = array<i64: 4, 1, 128>}, {transform_indices = @transform_6, window_bounds = array<i64: 1, 128, 128>}]} {
    %c0 = arith.constant 0 : index
    %c0_0 = arith.constant 0 : index
    %c0_1 = arith.constant 0 : index
    %0 = vector.load %arg1[%c0, %c0_0, %c0_1] : memref<1x128x128xf32, #tpu.memory_space<vmem>>, vector<1x128x128xf32>
    %1 = vector.shape_cast %0 : vector<1x128x128xf32> to vector<128x128xf32>
    %c0_2 = arith.constant 0 : index
    %c0_3 = arith.constant 0 : index
    %c0_4 = arith.constant 0 : index
    %2 = vector.load %arg2[%c0_2, %c0_3, %c0_4] : memref<1x128x128xf32, #tpu.memory_space<vmem>>, vector<1x128x128xf32>
    %3 = vector.shape_cast %2 : vector<1x128x128xf32> to vector<128x128xf32>
    %cst = arith.constant dense<0.000000e+00> : vector<128x128xf32>
    %4 = tpu.matmul %1, %3, %cst {dimension_numbers = #tpu.dot_dimension_numbers<[1], [0], [0], [1], [0, 0, 1, 1], [], []>} : vector<128x128xf32>, vector<128x128xf32>, vector<128x128xf32> -> vector<128x128xf32>
    %5 = arith.truncf %4 : vector<128x128xf32> to vector<128x128xbf16>
    %c0_5 = arith.constant 0 : index
    %c0_6 = arith.constant 0 : index
    %c0_7 = arith.constant 0 : index
    %6 = vector.load %arg3[%c0_5, %c0_6, %c0_7] : memref<4x128x128xbf16, #tpu.memory_space<vmem>>, vector<1x128x128xbf16>
    %7 = vector.shape_cast %6 : vector<1x128x128xbf16> to vector<128x128xbf16>
    %cst_8 = arith.constant dense<0.000000e+00> : vector<128x128xf32>
    %8 = tpu.matmul %5, %7, %cst_8 {dimension_numbers = #tpu.dot_dimension_numbers<[1], [0], [0], [1], [0, 0, 1, 1], [], []>} : vector<128x128xbf16>, vector<128x128xbf16>, vector<128x128xf32> -> vector<128x128xf32>
    %c0_9 = arith.constant 0 : index
    %c0_10 = arith.constant 0 : index
    %c0_11 = arith.constant 0 : index
    %9 = vector.load %arg4[%c0_9, %c0_10, %c0_11] : memref<4x1x128xf32, #tpu.memory_space<vmem>>, vector<1x1x128xf32>
    %10 = vector.shape_cast %9 : vector<1x1x128xf32> to vector<1x128xf32>
    %11 = vector.broadcast %10 : vector<1x128xf32> to vector<128x128xf32>
    %12 = arith.addf %8, %11 : vector<128x128xf32>
    %cst_12 = arith.constant 0.000000e+00 : f32
    %13 = vector.broadcast %cst_12 : f32 to vector<128x128xf32>
    %14 = arith.maximumf %12, %13 : vector<128x128xf32>
    %15 = arith.truncf %14 : vector<128x128xf32> to vector<128x128xbf16>
    %c0_13 = arith.constant 0 : index
    %c0_14 = arith.constant 0 : index
    %c0_15 = arith.constant 0 : index
    %16 = vector.load %arg5[%c0_13, %c0_14, %c0_15] : memref<4x128x128xbf16, #tpu.memory_space<vmem>>, vector<1x128x128xbf16>
    %17 = vector.shape_cast %16 : vector<1x128x128xbf16> to vector<128x128xbf16>
    %cst_16 = arith.constant dense<0.000000e+00> : vector<128x128xf32>
    %18 = tpu.matmul %15, %17, %cst_16 {dimension_numbers = #tpu.dot_dimension_numbers<[1], [0], [0], [1], [0, 0, 1, 1], [], []>} : vector<128x128xbf16>, vector<128x128xbf16>, vector<128x128xf32> -> vector<128x128xf32>
    %c0_17 = arith.constant 0 : index
    %c0_18 = arith.constant 0 : index
    %c0_19 = arith.constant 0 : index
    %19 = vector.load %arg6[%c0_17, %c0_18, %c0_19] : memref<4x1x128xf32, #tpu.memory_space<vmem>>, vector<1x1x128xf32>
    %20 = vector.shape_cast %19 : vector<1x1x128xf32> to vector<1x128xf32>
    %21 = vector.broadcast %20 : vector<1x128xf32> to vector<128x128xf32>
    %22 = arith.addf %18, %21 : vector<128x128xf32>
    %cst_20 = arith.constant 0.000000e+00 : f32
    %23 = vector.broadcast %cst_20 : f32 to vector<128x128xf32>
    %24 = arith.maximumf %22, %23 : vector<128x128xf32>
    %cst_21 = arith.constant dense<0.000000e+00> : vector<128x128xf32>
    %25 = tpu.matmul %1, %24, %cst_21 {dimension_numbers = #tpu.dot_dimension_numbers<[1], [0], [0], [1], [0, 0, 1, 1], [], []>} : vector<128x128xf32>, vector<128x128xf32>, vector<128x128xf32> -> vector<128x128xf32>
    %26 = arith.truncf %25 : vector<128x128xf32> to vector<128x128xbf16>
    %c1 = arith.constant 1 : index
    %c0_22 = arith.constant 0 : index
    %c0_23 = arith.constant 0 : index
    %27 = vector.load %arg3[%c1, %c0_22, %c0_23] : memref<4x128x128xbf16, #tpu.memory_space<vmem>>, vector<1x128x128xbf16>
    %28 = vector.shape_cast %27 : vector<1x128x128xbf16> to vector<128x128xbf16>
    %cst_24 = arith.constant dense<0.000000e+00> : vector<128x128xf32>
    %29 = tpu.matmul %26, %28, %cst_24 {dimension_numbers = #tpu.dot_dimension_numbers<[1], [0], [0], [1], [0, 0, 1, 1], [], []>} : vector<128x128xbf16>, vector<128x128xbf16>, vector<128x128xf32> -> vector<128x128xf32>
    %c1_25 = arith.constant 1 : index
    %c0_26 = arith.constant 0 : index
    %c0_27 = arith.constant 0 : index
    %30 = vector.load %arg4[%c1_25, %c0_26, %c0_27] : memref<4x1x128xf32, #tpu.memory_space<vmem>>, vector<1x1x128xf32>
    %31 = vector.shape_cast %30 : vector<1x1x128xf32> to vector<1x128xf32>
    %32 = vector.broadcast %31 : vector<1x128xf32> to vector<128x128xf32>
    %33 = arith.addf %29, %32 : vector<128x128xf32>
    %cst_28 = arith.constant 0.000000e+00 : f32
    %34 = vector.broadcast %cst_28 : f32 to vector<128x128xf32>
    %35 = arith.maximumf %33, %34 : vector<128x128xf32>
    %36 = arith.truncf %35 : vector<128x128xf32> to vector<128x128xbf16>
    %c1_29 = arith.constant 1 : index
    %c0_30 = arith.constant 0 : index
    %c0_31 = arith.constant 0 : index
    %37 = vector.load %arg5[%c1_29, %c0_30, %c0_31] : memref<4x128x128xbf16, #tpu.memory_space<vmem>>, vector<1x128x128xbf16>
    %38 = vector.shape_cast %37 : vector<1x128x128xbf16> to vector<128x128xbf16>
    %cst_32 = arith.constant dense<0.000000e+00> : vector<128x128xf32>
    %39 = tpu.matmul %36, %38, %cst_32 {dimension_numbers = #tpu.dot_dimension_numbers<[1], [0], [0], [1], [0, 0, 1, 1], [], []>} : vector<128x128xbf16>, vector<128x128xbf16>, vector<128x128xf32> -> vector<128x128xf32>
    %c1_33 = arith.constant 1 : index
    %c0_34 = arith.constant 0 : index
    %c0_35 = arith.constant 0 : index
    %40 = vector.load %arg6[%c1_33, %c0_34, %c0_35] : memref<4x1x128xf32, #tpu.memory_space<vmem>>, vector<1x1x128xf32>
    %41 = vector.shape_cast %40 : vector<1x1x128xf32> to vector<1x128xf32>
    %42 = vector.broadcast %41 : vector<1x128xf32> to vector<128x128xf32>
    %43 = arith.addf %39, %42 : vector<128x128xf32>
    %cst_36 = arith.constant 0.000000e+00 : f32
    %44 = vector.broadcast %cst_36 : f32 to vector<128x128xf32>
    %45 = arith.maximumf %43, %44 : vector<128x128xf32>
    %cst_37 = arith.constant dense<0.000000e+00> : vector<128x128xf32>
    %46 = tpu.matmul %1, %45, %cst_37 {dimension_numbers = #tpu.dot_dimension_numbers<[1], [0], [0], [1], [0, 0, 1, 1], [], []>} : vector<128x128xf32>, vector<128x128xf32>, vector<128x128xf32> -> vector<128x128xf32>
    %47 = arith.truncf %46 : vector<128x128xf32> to vector<128x128xbf16>
    %c2 = arith.constant 2 : index
    %c0_38 = arith.constant 0 : index
    %c0_39 = arith.constant 0 : index
    %48 = vector.load %arg3[%c2, %c0_38, %c0_39] : memref<4x128x128xbf16, #tpu.memory_space<vmem>>, vector<1x128x128xbf16>
    %49 = vector.shape_cast %48 : vector<1x128x128xbf16> to vector<128x128xbf16>
    %cst_40 = arith.constant dense<0.000000e+00> : vector<128x128xf32>
    %50 = tpu.matmul %47, %49, %cst_40 {dimension_numbers = #tpu.dot_dimension_numbers<[1], [0], [0], [1], [0, 0, 1, 1], [], []>} : vector<128x128xbf16>, vector<128x128xbf16>, vector<128x128xf32> -> vector<128x128xf32>
    %c2_41 = arith.constant 2 : index
    %c0_42 = arith.constant 0 : index
    %c0_43 = arith.constant 0 : index
    %51 = vector.load %arg4[%c2_41, %c0_42, %c0_43] : memref<4x1x128xf32, #tpu.memory_space<vmem>>, vector<1x1x128xf32>
    %52 = vector.shape_cast %51 : vector<1x1x128xf32> to vector<1x128xf32>
    %53 = vector.broadcast %52 : vector<1x128xf32> to vector<128x128xf32>
    %54 = arith.addf %50, %53 : vector<128x128xf32>
    %cst_44 = arith.constant 0.000000e+00 : f32
    %55 = vector.broadcast %cst_44 : f32 to vector<128x128xf32>
    %56 = arith.maximumf %54, %55 : vector<128x128xf32>
    %57 = arith.truncf %56 : vector<128x128xf32> to vector<128x128xbf16>
    %c2_45 = arith.constant 2 : index
    %c0_46 = arith.constant 0 : index
    %c0_47 = arith.constant 0 : index
    %58 = vector.load %arg5[%c2_45, %c0_46, %c0_47] : memref<4x128x128xbf16, #tpu.memory_space<vmem>>, vector<1x128x128xbf16>
    %59 = vector.shape_cast %58 : vector<1x128x128xbf16> to vector<128x128xbf16>
    %cst_48 = arith.constant dense<0.000000e+00> : vector<128x128xf32>
    %60 = tpu.matmul %57, %59, %cst_48 {dimension_numbers = #tpu.dot_dimension_numbers<[1], [0], [0], [1], [0, 0, 1, 1], [], []>} : vector<128x128xbf16>, vector<128x128xbf16>, vector<128x128xf32> -> vector<128x128xf32>
    %c2_49 = arith.constant 2 : index
    %c0_50 = arith.constant 0 : index
    %c0_51 = arith.constant 0 : index
    %61 = vector.load %arg6[%c2_49, %c0_50, %c0_51] : memref<4x1x128xf32, #tpu.memory_space<vmem>>, vector<1x1x128xf32>
    %62 = vector.shape_cast %61 : vector<1x1x128xf32> to vector<1x128xf32>
    %63 = vector.broadcast %62 : vector<1x128xf32> to vector<128x128xf32>
    %64 = arith.addf %60, %63 : vector<128x128xf32>
    %cst_52 = arith.constant 0.000000e+00 : f32
    %65 = vector.broadcast %cst_52 : f32 to vector<128x128xf32>
    %66 = arith.maximumf %64, %65 : vector<128x128xf32>
    %cst_53 = arith.constant dense<0.000000e+00> : vector<128x128xf32>
    %67 = tpu.matmul %1, %66, %cst_53 {dimension_numbers = #tpu.dot_dimension_numbers<[1], [0], [0], [1], [0, 0, 1, 1], [], []>} : vector<128x128xf32>, vector<128x128xf32>, vector<128x128xf32> -> vector<128x128xf32>
    %68 = arith.truncf %67 : vector<128x128xf32> to vector<128x128xbf16>
    %c3 = arith.constant 3 : index
    %c0_54 = arith.constant 0 : index
    %c0_55 = arith.constant 0 : index
    %69 = vector.load %arg3[%c3, %c0_54, %c0_55] : memref<4x128x128xbf16, #tpu.memory_space<vmem>>, vector<1x128x128xbf16>
    %70 = vector.shape_cast %69 : vector<1x128x128xbf16> to vector<128x128xbf16>
    %cst_56 = arith.constant dense<0.000000e+00> : vector<128x128xf32>
    %71 = tpu.matmul %68, %70, %cst_56 {dimension_numbers = #tpu.dot_dimension_numbers<[1], [0], [0], [1], [0, 0, 1, 1], [], []>} : vector<128x128xbf16>, vector<128x128xbf16>, vector<128x128xf32> -> vector<128x128xf32>
    %c3_57 = arith.constant 3 : index
    %c0_58 = arith.constant 0 : index
    %c0_59 = arith.constant 0 : index
    %72 = vector.load %arg4[%c3_57, %c0_58, %c0_59] : memref<4x1x128xf32, #tpu.memory_space<vmem>>, vector<1x1x128xf32>
    %73 = vector.shape_cast %72 : vector<1x1x128xf32> to vector<1x128xf32>
    %74 = vector.broadcast %73 : vector<1x128xf32> to vector<128x128xf32>
    %75 = arith.addf %71, %74 : vector<128x128xf32>
    %cst_60 = arith.constant 0.000000e+00 : f32
    %76 = vector.broadcast %cst_60 : f32 to vector<128x128xf32>
    %77 = arith.maximumf %75, %76 : vector<128x128xf32>
    %78 = arith.truncf %77 : vector<128x128xf32> to vector<128x128xbf16>
    %c3_61 = arith.constant 3 : index
    %c0_62 = arith.constant 0 : index
    %c0_63 = arith.constant 0 : index
    %79 = vector.load %arg5[%c3_61, %c0_62, %c0_63] : memref<4x128x128xbf16, #tpu.memory_space<vmem>>, vector<1x128x128xbf16>
    %80 = vector.shape_cast %79 : vector<1x128x128xbf16> to vector<128x128xbf16>
    %cst_64 = arith.constant dense<0.000000e+00> : vector<128x128xf32>
    %81 = tpu.matmul %78, %80, %cst_64 {dimension_numbers = #tpu.dot_dimension_numbers<[1], [0], [0], [1], [0, 0, 1, 1], [], []>} : vector<128x128xbf16>, vector<128x128xbf16>, vector<128x128xf32> -> vector<128x128xf32>
    %c3_65 = arith.constant 3 : index
    %c0_66 = arith.constant 0 : index
    %c0_67 = arith.constant 0 : index
    %82 = vector.load %arg6[%c3_65, %c0_66, %c0_67] : memref<4x1x128xf32, #tpu.memory_space<vmem>>, vector<1x1x128xf32>
    %83 = vector.shape_cast %82 : vector<1x1x128xf32> to vector<1x128xf32>
    %84 = vector.broadcast %83 : vector<1x128xf32> to vector<128x128xf32>
    %85 = arith.addf %81, %84 : vector<128x128xf32>
    %c0_68 = arith.constant 0 : index
    %c0_69 = arith.constant 0 : index
    %c0_70 = arith.constant 0 : index
    %86 = vector.load %arg7[%c0_68, %c0_69, %c0_70] : memref<1x128x128xf32, #tpu.memory_space<vmem>>, vector<1x128x128xf32>
    %87 = vector.shape_cast %86 : vector<1x128x128xf32> to vector<128x128xf32>
    %88 = vector.shape_cast %85 : vector<128x128xf32> to vector<1x128x128xf32>
    tpu.vector_store %arg7[%c0_68, %c0_69, %c0_70], %88 {strides = array<i32>} : memref<1x128x128xf32, #tpu.memory_space<vmem>>, vector<1x128x128xf32>,
    return
  }
  func.func @transform_0(%arg0: i32) -> (i32, i32, i32) {
    %c0_i32 = arith.constant 0 : i32
    %c0_i32_0 = arith.constant 0 : i32
    %c0_i32_1 = arith.constant 0 : i32
    return %arg0, %c0_i32, %c0_i32_0 : i32, i32, i32
  }
  func.func @transform_1(%arg0: i32) -> (i32, i32, i32) {
    %c0_i32 = arith.constant 0 : i32
    %c0_i32_0 = arith.constant 0 : i32
    %c0_i32_1 = arith.constant 0 : i32
    return %arg0, %c0_i32, %c0_i32_0 : i32, i32, i32
  }
  func.func @transform_2(%arg0: i32) -> (i32, i32, i32) {
    %c0_i32 = arith.constant 0 : i32
    %c0_i32_0 = arith.constant 0 : i32
    %c0_i32_1 = arith.constant 0 : i32
    %c0_i32_2 = arith.constant 0 : i32
    return %c0_i32, %c0_i32_0, %c0_i32_1 : i32, i32, i32
  }
  func.func @transform_3(%arg0: i32) -> (i32, i32, i32) {
    %c0_i32 = arith.constant 0 : i32
    %c0_i32_0 = arith.constant 0 : i32
    %c0_i32_1 = arith.constant 0 : i32
    %c0_i32_2 = arith.constant 0 : i32
    return %c0_i32, %c0_i32_0, %c0_i32_1 : i32, i32, i32
  }
  func.func @transform_4(%arg0: i32) -> (i32, i32, i32) {
    %c0_i32 = arith.constant 0 : i32
    %c0_i32_0 = arith.constant 0 : i32
    %c0_i32_1 = arith.constant 0 : i32
    %c0_i32_2 = arith.constant 0 : i32
    return %c0_i32, %c0_i32_0, %c0_i32_1 : i32, i32, i32
  }
  func.func @transform_5(%arg0: i32) -> (i32, i32, i32) {
    %c0_i32 = arith.constant 0 : i32
    %c0_i32_0 = arith.constant 0 : i32
    %c0_i32_1 = arith.constant 0 : i32
    %c0_i32_2 = arith.constant 0 : i32
    return %c0_i32, %c0_i32_0, %c0_i32_1 : i32, i32, i32
  }
  func.func @transform_6(%arg0: i32) -> (i32, i32, i32) {
    %c0_i32 = arith.constant 0 : i32
    %c0_i32_0 = arith.constant 0 : i32
    %c0_i32_1 = arith.constant 0 : i32
    return %arg0, %c0_i32, %c0_i32_0 : i32, i32, i32
  }
}

</mosaic_0001>

<llo_original>
// kernel: forward_batched.1
$region0: #{forward_batched.1}
  #allocation0 [shape = 'u32[]', space=smem, size = 0x4, offset = 0x4, fixed_abs, tag = 'smem constant byte address 0x4 - core index']
  #allocation1 [shape = 'u32[72,128]{1,0:T(1,128)}', space=vmem, size = 0x9000, scoped, tag = 'internal scratch']
  %s0 = inlined_call_operand.vmem [shape: f32[2,128,128], index: 0, kind: input, shape index: {}]
  %s1 = inlined_call_operand.vmem [shape: f32[2,128,128], index: 1, kind: input, shape index: {}]
  %s2 = inlined_call_operand.vmem [shape: bf16[4,128,128], index: 2, kind: input, shape index: {}]
  %s3 = inlined_call_operand.vmem [shape: f32[4,1,128], index: 3, kind: input, shape index: {}]
  %s4 = inlined_call_operand.vmem [shape: bf16[4,128,128], index: 4, kind: input, shape index: {}]
  %s5 = inlined_call_operand.vmem [shape: f32[4,1,128], index: 5, kind: input, shape index: {}]
  %s6 = inlined_call_operand.vmem [shape: f32[2,128,128], index: 6, kind: output, shape index: {}]
  %s7 = sld [smem:[#allocation0]]
  $region57: #{forward_batched.1} parent=0
    _
  %s9 = ssub.s32 1, %s7
  %s10 = scalar_select 0, %s9, %s7
  loop: start=0, step=1, limit=4
  $region2: #{forward_batched.1} parent=0 // loop_pre_header
    _
  $region3: #{forward_batched.1} parent=0 // loop_header
    %s12 = sphi 0, %s16
    %p13 = scmp.ge.s32.totalorder %s12, 4
    %s22 = sphi 0, %s24
    %s25 = sphi 0, %s22
    %s26 = sphi 0, %s25
    %s42 = sphi 0, %s26
    %s48 = sphi 0, %s50
    %s51 = sphi 0, %s48
    %s52 = sphi 0, %s51
    %s68 = sphi 0, %s52
    %s72 = sphi 0, %s72
    %s74 = sphi 0, %s72
    %s75 = sphi 0, %s74
    %s89 = sphi 0, %s75
    %s93 = sphi 0, %s93
    %s95 = sphi 0, %s93
    %s96 = sphi 0, %s95
    %s110 = sphi 0, %s96
    %s114 = sphi 0, %s114
    %s116 = sphi 0, %s114
    %s117 = sphi 0, %s116
    %s131 = sphi 0, %s117
    %s135 = sphi 0, %s135
    %s137 = sphi 0, %s135
    %s138 = sphi 0, %s137
    %s152 = sphi 0, %s138
    %s158 = sphi 0, %s160
    %s161 = sphi 0, %s158
    %s162 = sphi 0, %s161
    %s178 = sphi 0, %s162
  $region4: #{forward_batched.1} parent=0 // loop_header_branch
    %15 = sbr.rel (%p13) target = $region8
  $region5: #{forward_batched.1} parent=0 // loop_body
    %s17 = ssub.s32 %s12, 1
    %s18 = ssub.s32 %s12, 2
    %s19 = sadd.s32 %s12, 1
    %s20 = ssub.s32 %s12, %s19
    %p21 = scmp.eq.s32.totalorder %s20, 0
    %s23 = sadd.s32 %s22, 1
    %s24 = scalar_select %p21, %s22, %s23
    %p27 = pneg %p21
    %p28 = scmp.eq.s32.totalorder %s12, 1
    %p29 = por %p27, %p28
    %p30 = scmp.ne.s32.totalorder %s22, %s25
    %p31 = scmp.eq.s32.totalorder %s12, 0
    %p32 = por %p30, %p31
    %p33 = scmp.ne.s32.totalorder %s22, %s25
    %p34 = scmp.eq.s32.totalorder %s17, 1
    %p35 = por %p33, %p34
    %p36 = scmp.ne.s32.totalorder %s25, %s26
    %p37 = scmp.eq.s32.totalorder %s17, 0
    %p38 = por %p36, %p37
    %p39 = scmp.ne.s32.totalorder %s25, %s26
    %p40 = scmp.eq.s32.totalorder %s18, 1
    %p41 = por %p39, %p40
    %p43 = scmp.ne.s32.totalorder %s26, %s42
    %p44 = scmp.eq.s32.totalorder %s18, 0
    %p45 = por %p43, %p44
    %s46 = ssub.s32 %s12, %s19
    %p47 = scmp.eq.s32.totalorder %s46, 0
    %s49 = sadd.s32 %s48, 1
    %s50 = scalar_select %p47, %s48, %s49
    %p53 = pneg %p47
    %p54 = scmp.eq.s32.totalorder %s12, 1
    %p55 = por %p53, %p54
    %p56 = scmp.ne.s32.totalorder %s48, %s51
    %p57 = scmp.eq.s32.totalorder %s12, 0
    %p58 = por %p56, %p57
    %p59 = scmp.ne.s32.totalorder %s48, %s51
    %p60 = scmp.eq.s32.totalorder %s17, 1
    %p61 = por %p59, %p60
    %p62 = scmp.ne.s32.totalorder %s51, %s52
    %p63 = scmp.eq.s32.totalorder %s17, 0
    %p64 = por %p62, %p63
    %p65 = scmp.ne.s32.totalorder %s51, %s52
    %p66 = scmp.eq.s32.totalorder %s18, 1
    %p67 = por %p65, %p66
    %p69 = scmp.ne.s32.totalorder %s52, %s68
    %p70 = scmp.eq.s32.totalorder %s18, 0
    %p71 = por %p69, %p70
    %s73 = sadd.s32 %s72, 1
    %p76 = scmp.eq.s32.totalorder %s12, 1
    %p77 = scmp.ne.s32.totalorder %s72, %s74
    %p78 = scmp.eq.s32.totalorder %s12, 0
    %p79 = por %p77, %p78
    %p80 = scmp.ne.s32.totalorder %s72, %s74
    %p81 = scmp.eq.s32.totalorder %s17, 1
    %p82 = por %p80, %p81
    %p83 = scmp.ne.s32.totalorder %s74, %s75
    %p84 = scmp.eq.s32.totalorder %s17, 0
    %p85 = por %p83, %p84
    %p86 = scmp.ne.s32.totalorder %s74, %s75
    %p87 = scmp.eq.s32.totalorder %s18, 1
    %p88 = por %p86, %p87
    %p90 = scmp.ne.s32.totalorder %s75, %s89
    %p91 = scmp.eq.s32.totalorder %s18, 0
    %p92 = por %p90, %p91
    %s94 = sadd.s32 %s93, 1
    %p97 = scmp.eq.s32.totalorder %s12, 1
    %p98 = scmp.ne.s32.totalorder %s93, %s95
    %p99 = scmp.eq.s32.totalorder %s12, 0
    %p100 = por %p98, %p99
    %p101 = scmp.ne.s32.totalorder %s93, %s95
    %p102 = scmp.eq.s32.totalorder %s17, 1
    %p103 = por %p101, %p102
    %p104 = scmp.ne.s32.totalorder %s95, %s96
    %p105 = scmp.eq.s32.totalorder %s17, 0
    %p106 = por %p104, %p105
    %p107 = scmp.ne.s32.totalorder %s95, %s96
    %p108 = scmp.eq.s32.totalorder %s18, 1
    %p109 = por %p107, %p108
    %p111 = scmp.ne.s32.totalorder %s96, %s110
    %p112 = scmp.eq.s32.totalorder %s18, 0
    %p113 = por %p111, %p112
    %s115 = sadd.s32 %s114, 1
    %p118 = scmp.eq.s32.totalorder %s12, 1
    %p119 = scmp.ne.s32.totalorder %s114, %s116
    %p120 = scmp.eq.s32.totalorder %s12, 0
    %p121 = por %p119, %p120
    %p122 = scmp.ne.s32.totalorder %s114, %s116
    %p123 = scmp.eq.s32.totalorder %s17, 1
    %p124 = por %p122, %p123
    %p125 = scmp.ne.s32.totalorder %s116, %s117
    %p126 = scmp.eq.s32.totalorder %s17, 0
    %p127 = por %p125, %p126
    %p128 = scmp.ne.s32.totalorder %s116, %s117
    %p129 = scmp.eq.s32.totalorder %s18, 1
    %p130 = por %p128, %p129
    %p132 = scmp.ne.s32.totalorder %s117, %s131
    %p133 = scmp.eq.s32.totalorder %s18, 0
    %p134 = por %p132, %p133
    %s136 = sadd.s32 %s135, 1
    %p139 = scmp.eq.s32.totalorder %s12, 1
    %p140 = scmp.ne.s32.totalorder %s135, %s137
    %p141 = scmp.eq.s32.totalorder %s12, 0
    %p142 = por %p140, %p141
    %p143 = scmp.ne.s32.totalorder %s135, %s137
    %p144 = scmp.eq.s32.totalorder %s17, 1
    %p145 = por %p143, %p144
    %p146 = scmp.ne.s32.totalorder %s137, %s138
    %p147 = scmp.eq.s32.totalorder %s17, 0
    %p148 = por %p146, %p147
    %p149 = scmp.ne.s32.totalorder %s137, %s138
    %p150 = scmp.eq.s32.totalorder %s18, 1
    %p151 = por %p149, %p150
    %p153 = scmp.ne.s32.totalorder %s138, %s152
    %p154 = scmp.eq.s32.totalorder %s18, 0
    %p155 = por %p153, %p154
    %s156 = ssub.s32 %s12, %s19
    %p157 = scmp.eq.s32.totalorder %s156, 0
    %s159 = sadd.s32 %s158, 1
    %s160 = scalar_select %p157, %s158, %s159
    %p163 = pneg %p157
    %p164 = scmp.eq.s32.totalorder %s12, 1
    %p165 = por %p163, %p164
    %p166 = scmp.ne.s32.totalorder %s158, %s161
    %p167 = scmp.eq.s32.totalorder %s12, 0
    %p168 = por %p166, %p167
    %p169 = scmp.ne.s32.totalorder %s158, %s161
    %p170 = scmp.eq.s32.totalorder %s17, 1
    %p171 = por %p169, %p170
    %p172 = scmp.ne.s32.totalorder %s161, %s162
    %p173 = scmp.eq.s32.totalorder %s17, 0
    %p174 = por %p172, %p173
    %p175 = scmp.ne.s32.totalorder %s161, %s162
    %p176 = scmp.eq.s32.totalorder %s18, 1
    %p177 = por %p175, %p176
    %p179 = scmp.ne.s32.totalorder %s162, %s178
    %p180 = scmp.eq.s32.totalorder %s18, 0
    %p181 = por %p179, %p180
    %p182 = scmp.le.s32.totalorder 1, %s12
    %p183 = scmp.lt.s32.totalorder %s12, 3
    %p184 = pnand %p182, %p183
    %p185 = pneg %p184
    // Predicated region
    $region9: #{forward_batched.1} parent=5 // pred_check
      _
    $region10: #{forward_batched.1} parent=5 // pred_check_branch
      %187 = sbr.rel (%p184) target = $region12
    $region11: #{forward_batched.1} parent=5 // pred_region
      %s188 = ssub.s32 %s12, 1
      // Predicated region
      $region13: #{forward_batched.1} parent=11 // pred_check
        %p189 = pneg %p85
      $region14: #{forward_batched.1} parent=11 // pred_check_branch
        %191 = sbr.rel (%p189) target = $region16
      $region15: #{forward_batched.1} parent=11 // pred_region
        _
      $region16: #{forward_batched.1} parent=11 // pred_fallthru
        _
      // Predicated region
      $region17: #{forward_batched.1} parent=11 // pred_check
        %p192 = pneg %p106
      $region18: #{forward_batched.1} parent=11 // pred_check_branch
        %194 = sbr.rel (%p192) target = $region20
      $region19: #{forward_batched.1} parent=11 // pred_region
        _
      $region20: #{forward_batched.1} parent=11 // pred_fallthru
        _
      // Predicated region
      $region21: #{forward_batched.1} parent=11 // pred_check
        %p195 = pneg %p127
      $region22: #{forward_batched.1} parent=11 // pred_check_branch
        %197 = sbr.rel (%p195) target = $region24
      $region23: #{forward_batched.1} parent=11 // pred_region
        _
      $region24: #{forward_batched.1} parent=11 // pred_fallthru
        _
      // Predicated region
      $region25: #{forward_batched.1} parent=11 // pred_check
        %p198 = pneg %p148
      $region26: #{forward_batched.1} parent=11 // pred_check_branch
        %200 = sbr.rel (%p198) target = $region28
      $region27: #{forward_batched.1} parent=11 // pred_region
        _
      $region28: #{forward_batched.1} parent=11 // pred_fallthru
        _
    $region12: #{forward_batched.1} parent=5 // pred_fallthru
      _
    %p201 = scmp.lt.s32.totalorder %s12, 2
    // Predicated region
    $region29: #{forward_batched.1} parent=5 // pred_check
      %p202 = pneg %p201
    $region30: #{forward_batched.1} parent=5 // pred_check_branch
      %204 = sbr.rel (%p202) target = $region32
    $region31: #{forward_batched.1} parent=5 // pred_region
      // Predicated region
      $region33: #{forward_batched.1} parent=31 // pred_check
        %p205 = pneg %p32
      $region34: #{forward_batched.1} parent=31 // pred_check_branch
        %207 = sbr.rel (%p205) target = $region36
      $region35: #{forward_batched.1} parent=31 // pred_region
        %p208 = scmp.lt.s32.totalorder %s12, 1
        %s209 = scalar_select %p208, %s12, 1
        %s210 = smul.addr %s209, 16
        %s211 = smul.addr %s210, 8
        %s212 = scalar_lea.vmem %s0, %s211
      $region36: #{forward_batched.1} parent=31 // pred_fallthru
        _
      // Predicated region
      $region37: #{forward_batched.1} parent=31 // pred_check
        %p213 = pneg %p58
      $region38: #{forward_batched.1} parent=31 // pred_check_branch
        %215 = sbr.rel (%p213) target = $region40
      $region39: #{forward_batched.1} parent=31 // pred_region
        %p216 = scmp.lt.s32.totalorder %s12, 1
        %s217 = scalar_select %p216, %s12, 1
        %s218 = smul.addr %s217, 16
        %s219 = smul.addr %s218, 8
        %s220 = scalar_lea.vmem %s1, %s219
      $region40: #{forward_batched.1} parent=31 // pred_fallthru
        _
    $region32: #{forward_batched.1} parent=5 // pred_fallthru
      _
    %p221 = scmp.le.s32.totalorder 1, %s12
    %p222 = scmp.lt.s32.totalorder %s12, 3
    %p223 = pnand %p221, %p222
    %p224 = pneg %p223
    // Predicated region
    $region41: #{forward_batched.1} parent=5 // pred_check
      _
    $region42: #{forward_batched.1} parent=5 // pred_check_branch
      %226 = sbr.rel (%p223) target = $region44
    $region43: #{forward_batched.1} parent=5 // pred_region
      %s227 = ssub.s32 %s12, 1
      %p228 = scmp.lt.s32.totalorder %s17, 1
      %s229 = scalar_select %p228, %s17, 1
      %s230 = smul.addr %s229, 16
      %s231 = smul.addr %s230, 8
      %s232 = scalar_lea.vmem %s0, %s231
      %p233 = pneg %p38
      %p234 = pneg %p35
      %p235 = scmp.lt.s32.totalorder %s17, 1
      %s236 = scalar_select %p235, %s17, 1
      %s237 = smul.addr %s236, 16
      %s238 = smul.addr %s237, 8
      %s239 = scalar_lea.vmem %s1, %s238
      %p240 = pneg %p64
      %p241 = pneg %p61
      %p242 = pneg %p85
      %p243 = pneg %p82
      %p244 = pneg %p106
      %p245 = pneg %p103
      %p246 = pneg %p127
      %p247 = pneg %p124
      %p248 = pneg %p148
      %p249 = pneg %p145
      %p250 = pneg %p174
      %p251 = pneg %p171
      %p252 = scmp.lt.s32.totalorder %s17, 1
      %s253 = scalar_select %p252, %s17, 1
      %s254 = smul.addr %s253, 16
      %s255 = smul.addr %s254, 8
      %s256 = scalar_lea.vmem %s6, %s255
      %p257 = scmp.lt.s32.totalorder %s17, 1
      %s258 = scalar_select %p257, %s17, 1
      %s259 = smul.addr %s258, 16
      %s260 = smul.addr %s259, 8
      %s261 = scalar_lea.vmem %s0, %s260
      %p262 = scmp.lt.s32.totalorder %s17, 1
      %s263 = scalar_select %p262, %s17, 1
      %s264 = smul.addr %s263, 16
      %s265 = smul.addr %s264, 8
      %s266 = scalar_lea.vmem %s1, %s265
      %p267 = scmp.lt.s32.totalorder %s17, 1
      %s268 = scalar_select %p267, %s17, 1
      %s269 = smul.addr %s268, 16
      %s270 = smul.addr %s269, 8
      %s271 = scalar_lea.vmem %s6, %s270
      %v272 = vld [vmem:[%s261] sm:$0xff]
      %v273 = vld [vmem:[%s261 + $0x8] sm:$0xff]
      %v274 = vld [vmem:[%s261 + $0x10] sm:$0xff]
      %v275 = vld [vmem:[%s261 + $0x18] sm:$0xff]
      %v276 = vld [vmem:[%s261 + $0x20] sm:$0xff]
      %v277 = vld [vmem:[%s261 + $0x28] sm:$0xff]
      %v278 = vld [vmem:[%s261 + $0x30] sm:$0xff]
      %v279 = vld [vmem:[%s261 + $0x38] sm:$0xff]
      %v280 = vld [vmem:[%s261 + $0x40] sm:$0xff]
      %v281 = vld [vmem:[%s261 + $0x48] sm:$0xff]
      %v282 = vld [vmem:[%s261 + $0x50] sm:$0xff]
      %v283 = vld [vmem:[%s261 + $0x58] sm:$0xff]
      %v284 = vld [vmem:[%s261 + $0x60] sm:$0xff]
      %v285 = vld [vmem:[%s261 + $0x68] sm:$0xff]
      %v286 = vld [vmem:[%s261 + $0x70] sm:$0xff]
      %v287 = vld [vmem:[%s261 + $0x78] sm:$0xff]
      %v288 = vld [vmem:[%s266] sm:$0xff]
      %v289 = vld [vmem:[%s266 + $0x8] sm:$0xff]
      %v290 = vld [vmem:[%s266 + $0x10] sm:$0xff]
      %v291 = vld [vmem:[%s266 + $0x18] sm:$0xff]
      %v292 = vld [vmem:[%s266 + $0x20] sm:$0xff]
      %v293 = vld [vmem:[%s266 + $0x28] sm:$0xff]
      %v294 = vld [vmem:[%s266 + $0x30] sm:$0xff]
      %v295 = vld [vmem:[%s266 + $0x38] sm:$0xff]
      %v296 = vld [vmem:[%s266 + $0x40] sm:$0xff]
      %v297 = vld [vmem:[%s266 + $0x48] sm:$0xff]
      %v298 = vld [vmem:[%s266 + $0x50] sm:$0xff]
      %v299 = vld [vmem:[%s266 + $0x58] sm:$0xff]
      %v300 = vld [vmem:[%s266 + $0x60] sm:$0xff]
      %v301 = vld [vmem:[%s266 + $0x68] sm:$0xff]
      %v302 = vld [vmem:[%s266 + $0x70] sm:$0xff]
      %v303 = vld [vmem:[%s266 + $0x78] sm:$0xff]
      %304 = vmatpush.msra.mxu0 %v303
      %305 = vmatpush.msra.mxu0 %v302
      %306 = vmatpush.msra.mxu0 %v301
      %307 = vmatpush.msra.mxu0 %v300
      %308 = vmatpush.msra.mxu0 %v299
      %309 = vmatpush.msra.mxu0 %v298
      %310 = vmatpush.msra.mxu0 %v297
      %311 = vmatpush.msra.mxu0 %v296
      %312 = vmatpush.msra.mxu0 %v295
      %313 = vmatpush.msra.mxu0 %v294
      %314 = vmatpush.msra.mxu0 %v293
      %315 = vmatpush.msra.mxu0 %v292
      %316 = vmatpush.msra.mxu0 %v291
      %317 = vmatpush.msra.mxu0 %v290
      %318 = vmatpush.msra.mxu0 %v289
      %319 = vmatpush.msra.mxu0 %v288
      %320 = vmatmul.f32.gmra.mxu0 %v272
      %v321 = vpop.f32.mrf.mxu0
      %v322 = vadd.f32 0.0, %v321
      %323 = vmatmul.f32.gmra.mxu0 %v273
      %v324 = vpop.f32.mrf.mxu0
      %v325 = vadd.f32 0.0, %v324
      %326 = vmatmul.f32.gmra.mxu0 %v274
      %v327 = vpop.f32.mrf.mxu0
      %v328 = vadd.f32 0.0, %v327
      %329 = vmatmul.f32.gmra.mxu0 %v275
      %v330 = vpop.f32.mrf.mxu0
      %v331 = vadd.f32 0.0, %v330
      %332 = vmatmul.f32.gmra.mxu0 %v276
      %v333 = vpop.f32.mrf.mxu0
      %v334 = vadd.f32 0.0, %v333
      %335 = vmatmul.f32.gmra.mxu0 %v277
      %v336 = vpop.f32.mrf.mxu0
      %v337 = vadd.f32 0.0, %v336
      %338 = vmatmul.f32.gmra.mxu0 %v278
      %v339 = vpop.f32.mrf.mxu0
      %v340 = vadd.f32 0.0, %v339
      %341 = vmatmul.f32.gmra.mxu0 %v279
      %v342 = vpop.f32.mrf.mxu0
      %v343 = vadd.f32 0.0, %v342
      %344 = vmatmul.f32.gmra.mxu0 %v280
      %v345 = vpop.f32.mrf.mxu0
      %v346 = vadd.f32 0.0, %v345
      %347 = vmatmul.f32.gmra.mxu0 %v281
      %v348 = vpop.f32.mrf.mxu0
      %v349 = vadd.f32 0.0, %v348
      %350 = vmatmul.f32.gmra.mxu0 %v282
      %v351 = vpop.f32.mrf.mxu0
      %v352 = vadd.f32 0.0, %v351
      %353 = vmatmul.f32.gmra.mxu0 %v283
      %v354 = vpop.f32.mrf.mxu0
      %v355 = vadd.f32 0.0, %v354
      %356 = vmatmul.f32.gmra.mxu0 %v284
      %v357 = vpop.f32.mrf.mxu0
      %v358 = vadd.f32 0.0, %v357
      %359 = vmatmul.f32.gmra.mxu0 %v285
      %v360 = vpop.f32.mrf.mxu0
      %v361 = vadd.f32 0.0, %v360
      %362 = vmatmul.f32.gmra.mxu0 %v286
      %v363 = vpop.f32.mrf.mxu0
      %v364 = vadd.f32 0.0, %v363
      %365 = vmatmul.f32.gmra.mxu0 %v287
      %v366 = vpop.f32.mrf.mxu0
      %v367 = vadd.f32 0.0, %v366
      %368 = vdwg.mxu0
      %v369 = vpack.c.bf16 %v325, %v322
      %v370 = vpack.c.bf16 %v331, %v328
      %v371 = vpack.c.bf16 %v337, %v334
      %v372 = vpack.c.bf16 %v343, %v340
      %v373 = vpack.c.bf16 %v349, %v346
      %v374 = vpack.c.bf16 %v355, %v352
      %v375 = vpack.c.bf16 %v361, %v358
      %v376 = vpack.c.bf16 %v367, %v364
      %v377 = vld [vmem:[%s2] sm:$0xf]
      %v378 = vld [vmem:[%s2 + $0x4] sm:$0xf]
      %v379 = vld [vmem:[%s2 + $0x8] sm:$0xf]
      %v380 = vld [vmem:[%s2 + $0xc] sm:$0xf]
      %v381 = vld [vmem:[%s2 + $0x10] sm:$0xf]
      %v382 = vld [vmem:[%s2 + $0x14] sm:$0xf]
      %v383 = vld [vmem:[%s2 + $0x18] sm:$0xf]
      %v384 = vld [vmem:[%s2 + $0x1c] sm:$0xf]
      %v385 = vld [vmem:[%s2 + $0x20] sm:$0xf]
      %v386 = vld [vmem:[%s2 + $0x24] sm:$0xf]
      %v387 = vld [vmem:[%s2 + $0x28] sm:$0xf]
      %v388 = vld [vmem:[%s2 + $0x2c] sm:$0xf]
      %v389 = vld [vmem:[%s2 + $0x30] sm:$0xf]
      %v390 = vld [vmem:[%s2 + $0x34] sm:$0xf]
      %v391 = vld [vmem:[%s2 + $0x38] sm:$0xf]
      %v392 = vld [vmem:[%s2 + $0x3c] sm:$0xf]
      %v393 = vld [vmem:[%s3] sm:$0x1]
      %v395 = vperm.slane %v393, 0
      %v413 = vunpack.c.l.b16 %v377
      %v414 = vunpack.c.l.b16 %v378
      %v415 = vunpack.c.l.b16 %v379
      %v416 = vunpack.c.l.b16 %v380
      %v417 = vunpack.c.l.b16 %v381
      %v418 = vunpack.c.l.b16 %v382
      %v419 = vunpack.c.l.b16 %v383
      %v420 = vunpack.c.l.b16 %v384
      %v421 = vunpack.c.l.b16 %v385
      %v422 = vunpack.c.l.b16 %v386
      %v423 = vunpack.c.l.b16 %v387
      %v424 = vunpack.c.l.b16 %v388
      %v425 = vunpack.c.l.b16 %v389
      %v426 = vunpack.c.l.b16 %v390
      %v427 = vunpack.c.l.b16 %v391
      %v428 = vunpack.c.l.b16 %v392
      %v429 = vpack.c.b16 %v414, %v413
      %v430 = vpack.c.b16 %v416, %v415
      %v431 = vpack.c.b16 %v418, %v417
      %v432 = vpack.c.b16 %v420, %v419
      %v433 = vpack.c.b16 %v422, %v421
      %v434 = vpack.c.b16 %v424, %v423
      %v435 = vpack.c.b16 %v426, %v425
      %v436 = vpack.c.b16 %v428, %v427
      %445 = vmatpush.bf16.msra.mxu0 %v436
      %446 = vmatpush.bf16.msra.mxu0 %v435
      %447 = vmatpush.bf16.msra.mxu0 %v434
      %448 = vmatpush.bf16.msra.mxu0 %v433
      %449 = vmatpush.bf16.msra.mxu0 %v432
      %450 = vmatpush.bf16.msra.mxu0 %v431
      %451 = vmatpush.bf16.msra.mxu0 %v430
      %452 = vmatpush.bf16.msra.mxu0 %v429
      %453 = vmatmul.bf16.gmra.mxu0 %v369
      %v454 = vpop.f32.mrf.mxu0
      %v455 = vadd.f32 %v395, %v454
      %v456 = vpop.f32.mrf.mxu0
      %v457 = vadd.f32 %v395, %v456
      %458 = vmatmul.bf16.gmra.mxu0 %v370
      %v459 = vpop.f32.mrf.mxu0
      %v460 = vadd.f32 %v395, %v459
      %v461 = vpop.f32.mrf.mxu0
      %v462 = vadd.f32 %v395, %v461
      %463 = vmatmul.bf16.gmra.mxu0 %v371
      %v464 = vpop.f32.mrf.mxu0
      %v465 = vadd.f32 %v395, %v464
      %v466 = vpop.f32.mrf.mxu0
      %v467 = vadd.f32 %v395, %v466
      %468 = vmatmul.bf16.gmra.mxu0 %v372
      %v469 = vpop.f32.mrf.mxu0
      %v470 = vadd.f32 %v395, %v469
      %v471 = vpop.f32.mrf.mxu0
      %v472 = vadd.f32 %v395, %v471
      %473 = vmatmul.bf16.gmra.mxu0 %v373
      %v474 = vpop.f32.mrf.mxu0
      %v475 = vadd.f32 %v395, %v474
      %v476 = vpop.f32.mrf.mxu0
      %v477 = vadd.f32 %v395, %v476
      %478 = vmatmul.bf16.gmra.mxu0 %v374
      %v479 = vpop.f32.mrf.mxu0
      %v480 = vadd.f32 %v395, %v479
      %v481 = vpop.f32.mrf.mxu0
      %v482 = vadd.f32 %v395, %v481
      %483 = vmatmul.bf16.gmra.mxu0 %v375
      %v484 = vpop.f32.mrf.mxu0
      %v485 = vadd.f32 %v395, %v484
      %v486 = vpop.f32.mrf.mxu0
      %v487 = vadd.f32 %v395, %v486
      %488 = vmatmul.bf16.gmra.mxu0 %v376
      %v489 = vpop.f32.mrf.mxu0
      %v490 = vadd.f32 %v395, %v489
      %v491 = vpop.f32.mrf.mxu0
      %v492 = vadd.f32 %v395, %v491
      %493 = vdwg.mxu0
      %v494 = vmax.f32 %v455, 0.0
      %v495 = vmax.f32 %v457, 0.0
      %v496 = vmax.f32 %v460, 0.0
      %v497 = vmax.f32 %v462, 0.0
      %v498 = vmax.f32 %v465, 0.0
      %v499 = vmax.f32 %v467, 0.0
      %v500 = vmax.f32 %v470, 0.0
      %v501 = vmax.f32 %v472, 0.0
      %v502 = vmax.f32 %v475, 0.0
      %v503 = vmax.f32 %v477, 0.0
      %v504 = vmax.f32 %v480, 0.0
      %v505 = vmax.f32 %v482, 0.0
      %v506 = vmax.f32 %v485, 0.0
      %v507 = vmax.f32 %v487, 0.0
      %v508 = vmax.f32 %v490, 0.0
      %v509 = vmax.f32 %v492, 0.0
      %v510 = vpack.c.bf16 %v495, %v494
      %v511 = vpack.c.bf16 %v497, %v496
      %v512 = vpack.c.bf16 %v499, %v498
      %v513 = vpack.c.bf16 %v501, %v500
      %v514 = vpack.c.bf16 %v503, %v502
      %v515 = vpack.c.bf16 %v505, %v504
      %v516 = vpack.c.bf16 %v507, %v506
      %v517 = vpack.c.bf16 %v509, %v508
      %v518 = vld [vmem:[%s4] sm:$0xf]
      %v519 = vld [vmem:[%s4 + $0x4] sm:$0xf]
      %v520 = vld [vmem:[%s4 + $0x8] sm:$0xf]
      %v521 = vld [vmem:[%s4 + $0xc] sm:$0xf]
      %v522 = vld [vmem:[%s4 + $0x10] sm:$0xf]
      %v523 = vld [vmem:[%s4 + $0x14] sm:$0xf]
      %v524 = vld [vmem:[%s4 + $0x18] sm:$0xf]
      %v525 = vld [vmem:[%s4 + $0x1c] sm:$0xf]
      %v526 = vld [vmem:[%s4 + $0x20] sm:$0xf]
      %v527 = vld [vmem:[%s4 + $0x24] sm:$0xf]
      %v528 = vld [vmem:[%s4 + $0x28] sm:$0xf]
      %v529 = vld [vmem:[%s4 + $0x2c] sm:$0xf]
      %v530 = vld [vmem:[%s4 + $0x30] sm:$0xf]
      %v531 = vld [vmem:[%s4 + $0x34] sm:$0xf]
      %v532 = vld [vmem:[%s4 + $0x38] sm:$0xf]
      %v533 = vld [vmem:[%s4 + $0x3c] sm:$0xf]
      %v534 = vld [vmem:[%s5] sm:$0x1]
      %v536 = vperm.slane %v534, 0
      %v554 = vunpack.c.l.b16 %v518
      %v555 = vunpack.c.l.b16 %v519
      %v556 = vunpack.c.l.b16 %v520
      %v557 = vunpack.c.l.b16 %v521
      %v558 = vunpack.c.l.b16 %v522
      %v559 = vunpack.c.l.b16 %v523
      %v560 = vunpack.c.l.b16 %v524
      %v561 = vunpack.c.l.b16 %v525
      %v562 = vunpack.c.l.b16 %v526
      %v563 = vunpack.c.l.b16 %v527
      %v564 = vunpack.c.l.b16 %v528
      %v565 = vunpack.c.l.b16 %v529
      %v566 = vunpack.c.l.b16 %v530
      %v567 = vunpack.c.l.b16 %v531
      %v568 = vunpack.c.l.b16 %v532
      %v569 = vunpack.c.l.b16 %v533
      %v570 = vpack.c.b16 %v555, %v554
      %v571 = vpack.c.b16 %v557, %v556
      %v572 = vpack.c.b16 %v559, %v558
      %v573 = vpack.c.b16 %v561, %v560
      %v574 = vpack.c.b16 %v563, %v562
      %v575 = vpack.c.b16 %v565, %v564
      %v576 = vpack.c.b16 %v567, %v566
      %v577 = vpack.c.b16 %v569, %v568
      %586 = vmatpush.bf16.msra.mxu0 %v577
      %587 = vmatpush.bf16.msra.mxu0 %v576
      %588 = vmatpush.bf16.msra.mxu0 %v575
      %589 = vmatpush.bf16.msra.mxu0 %v574
      %590 = vmatpush.bf16.msra.mxu0 %v573
      %591 = vmatpush.bf16.msra.mxu0 %v572
      %592 = vmatpush.bf16.msra.mxu0 %v571
      %593 = vmatpush.bf16.msra.mxu0 %v570
      %594 = vmatmul.bf16.gmra.mxu0 %v510
      %v595 = vpop.f32.mrf.mxu0
      %v596 = vadd.f32 %v536, %v595
      %v597 = vpop.f32.mrf.mxu0
      %v598 = vadd.f32 %v536, %v597
      %599 = vmatmul.bf16.gmra.mxu0 %v511
      %v600 = vpop.f32.mrf.mxu0
      %v601 = vadd.f32 %v536, %v600
      %v602 = vpop.f32.mrf.mxu0
      %v603 = vadd.f32 %v536, %v602
      %604 = vmatmul.bf16.gmra.mxu0 %v512
      %v605 = vpop.f32.mrf.mxu0
      %v606 = vadd.f32 %v536, %v605
      %v607 = vpop.f32.mrf.mxu0
      %v608 = vadd.f32 %v536, %v607
      %609 = vmatmul.bf16.gmra.mxu0 %v513
      %v610 = vpop.f32.mrf.mxu0
      %v611 = vadd.f32 %v536, %v610
      %v612 = vpop.f32.mrf.mxu0
      %v613 = vadd.f32 %v536, %v612
      %614 = vmatmul.bf16.gmra.mxu0 %v514
      %v615 = vpop.f32.mrf.mxu0
      %v616 = vadd.f32 %v536, %v615
      %v617 = vpop.f32.mrf.mxu0
      %v618 = vadd.f32 %v536, %v617
      %619 = vmatmul.bf16.gmra.mxu0 %v515
      %v620 = vpop.f32.mrf.mxu0
      %v621 = vadd.f32 %v536, %v620
      %v622 = vpop.f32.mrf.mxu0
      %v623 = vadd.f32 %v536, %v622
      %624 = vmatmul.bf16.gmra.mxu0 %v516
      %v625 = vpop.f32.mrf.mxu0
      %v626 = vadd.f32 %v536, %v625
      %v627 = vpop.f32.mrf.mxu0
      %v628 = vadd.f32 %v536, %v627
      %629 = vmatmul.bf16.gmra.mxu0 %v517
      %v630 = vpop.f32.mrf.mxu0
      %v631 = vadd.f32 %v536, %v630
      %v632 = vpop.f32.mrf.mxu0
      %v633 = vadd.f32 %v536, %v632
      %634 = vdwg.mxu0
      %v635 = vmax.f32 %v596, 0.0
      %v636 = vmax.f32 %v598, 0.0
      %v637 = vmax.f32 %v601, 0.0
      %v638 = vmax.f32 %v603, 0.0
      %v639 = vmax.f32 %v606, 0.0
      %v640 = vmax.f32 %v608, 0.0
      %v641 = vmax.f32 %v611, 0.0
      %v642 = vmax.f32 %v613, 0.0
      %v643 = vmax.f32 %v616, 0.0
      %v644 = vmax.f32 %v618, 0.0
      %v645 = vmax.f32 %v621, 0.0
      %v646 = vmax.f32 %v623, 0.0
      %v647 = vmax.f32 %v626, 0.0
      %v648 = vmax.f32 %v628, 0.0
      %v649 = vmax.f32 %v631, 0.0
      %v650 = vmax.f32 %v633, 0.0
      %651 = vmatpush.msra.mxu0 %v650
      %652 = vmatpush.msra.mxu0 %v649
      %653 = vmatpush.msra.mxu0 %v648
      %654 = vmatpush.msra.mxu0 %v647
      %655 = vmatpush.msra.mxu0 %v646
      %656 = vmatpush.msra.mxu0 %v645
      %657 = vmatpush.msra.mxu0 %v644
      %658 = vmatpush.msra.mxu0 %v643
      %659 = vmatpush.msra.mxu0 %v642
      %660 = vmatpush.msra.mxu0 %v641
      %661 = vmatpush.msra.mxu0 %v640
      %662 = vmatpush.msra.mxu0 %v639
      %663 = vmatpush.msra.mxu0 %v638
      %664 = vmatpush.msra.mxu0 %v637
      %665 = vmatpush.msra.mxu0 %v636
      %666 = vmatpush.msra.mxu0 %v635
      %667 = vmatmul.f32.gmra.mxu0 %v272
      %v668 = vpop.f32.mrf.mxu0
      %v669 = vadd.f32 0.0, %v668
      %670 = vmatmul.f32.gmra.mxu0 %v273
      %v671 = vpop.f32.mrf.mxu0
      %v672 = vadd.f32 0.0, %v671
      %673 = vmatmul.f32.gmra.mxu0 %v274
      %v674 = vpop.f32.mrf.mxu0
      %v675 = vadd.f32 0.0, %v674
      %676 = vmatmul.f32.gmra.mxu0 %v275
      %v677 = vpop.f32.mrf.mxu0
      %v678 = vadd.f32 0.0, %v677
      %679 = vmatmul.f32.gmra.mxu0 %v276
      %v680 = vpop.f32.mrf.mxu0
      %v681 = vadd.f32 0.0, %v680
      %682 = vmatmul.f32.gmra.mxu0 %v277
      %v683 = vpop.f32.mrf.mxu0
      %v684 = vadd.f32 0.0, %v683
      %685 = vmatmul.f32.gmra.mxu0 %v278
      %v686 = vpop.f32.mrf.mxu0
      %v687 = vadd.f32 0.0, %v686
      %688 = vmatmul.f32.gmra.mxu0 %v279
      %v689 = vpop.f32.mrf.mxu0
      %v690 = vadd.f32 0.0, %v689
      %691 = vmatmul.f32.gmra.mxu0 %v280
      %v692 = vpop.f32.mrf.mxu0
      %v693 = vadd.f32 0.0, %v692
      %694 = vmatmul.f32.gmra.mxu0 %v281
      %v695 = vpop.f32.mrf.mxu0
      %v696 = vadd.f32 0.0, %v695
      %697 = vmatmul.f32.gmra.mxu0 %v282
      %v698 = vpop.f32.mrf.mxu0
      %v699 = vadd.f32 0.0, %v698
      %700 = vmatmul.f32.gmra.mxu0 %v283
      %v701 = vpop.f32.mrf.mxu0
      %v702 = vadd.f32 0.0, %v701
      %703 = vmatmul.f32.gmra.mxu0 %v284
      %v704 = vpop.f32.mrf.mxu0
      %v705 = vadd.f32 0.0, %v704
      %706 = vmatmul.f32.gmra.mxu0 %v285
      %v707 = vpop.f32.mrf.mxu0
      %v708 = vadd.f32 0.0, %v707
      %709 = vmatmul.f32.gmra.mxu0 %v286
      %v710 = vpop.f32.mrf.mxu0
      %v711 = vadd.f32 0.0, %v710
      %712 = vmatmul.f32.gmra.mxu0 %v287
      %v713 = vpop.f32.mrf.mxu0
      %v714 = vadd.f32 0.0, %v713
      %715 = vdwg.mxu0
      %v716 = vpack.c.bf16 %v672, %v669
      %v717 = vpack.c.bf16 %v678, %v675
      %v718 = vpack.c.bf16 %v684, %v681
      %v719 = vpack.c.bf16 %v690, %v687
      %v720 = vpack.c.bf16 %v696, %v693
      %v721 = vpack.c.bf16 %v702, %v699
      %v722 = vpack.c.bf16 %v708, %v705
      %v723 = vpack.c.bf16 %v714, %v711
      %s724 = scalar_lea.vmem %s2, 64
      %v725 = vld [vmem:[%s724] sm:$0xf]
      %v726 = vld [vmem:[%s724 + $0x4] sm:$0xf]
      %v727 = vld [vmem:[%s724 + $0x8] sm:$0xf]
      %v728 = vld [vmem:[%s724 + $0xc] sm:$0xf]
      %v729 = vld [vmem:[%s724 + $0x10] sm:$0xf]
      %v730 = vld [vmem:[%s724 + $0x14] sm:$0xf]
      %v731 = vld [vmem:[%s724 + $0x18] sm:$0xf]
      %v732 = vld [vmem:[%s724 + $0x1c] sm:$0xf]
      %v733 = vld [vmem:[%s724 + $0x20] sm:$0xf]
      %v734 = vld [vmem:[%s724 + $0x24] sm:$0xf]
      %v735 = vld [vmem:[%s724 + $0x28] sm:$0xf]
      %v736 = vld [vmem:[%s724 + $0x2c] sm:$0xf]
      %v737 = vld [vmem:[%s724 + $0x30] sm:$0xf]
      %v738 = vld [vmem:[%s724 + $0x34] sm:$0xf]
      %v739 = vld [vmem:[%s724 + $0x38] sm:$0xf]
      %v740 = vld [vmem:[%s724 + $0x3c] sm:$0xf]
      %s741 = scalar_lea.vmem %s3, 1
      %v742 = vld [vmem:[%s741] sm:$0x1]
      %v744 = vperm.slane %v742, 0
      %v762 = vunpack.c.l.b16 %v725
      %v763 = vunpack.c.l.b16 %v726
      %v764 = vunpack.c.l.b16 %v727
      %v765 = vunpack.c.l.b16 %v728
      %v766 = vunpack.c.l.b16 %v729
      %v767 = vunpack.c.l.b16 %v730
      %v768 = vunpack.c.l.b16 %v731
      %v769 = vunpack.c.l.b16 %v732
      %v770 = vunpack.c.l.b16 %v733
      %v771 = vunpack.c.l.b16 %v734
      %v772 = vunpack.c.l.b16 %v735
      %v773 = vunpack.c.l.b16 %v736
      %v774 = vunpack.c.l.b16 %v737
      %v775 = vunpack.c.l.b16 %v738
      %v776 = vunpack.c.l.b16 %v739
      %v777 = vunpack.c.l.b16 %v740
      %v778 = vpack.c.b16 %v763, %v762
      %v779 = vpack.c.b16 %v765, %v764
      %v780 = vpack.c.b16 %v767, %v766
      %v781 = vpack.c.b16 %v769, %v768
      %v782 = vpack.c.b16 %v771, %v770
      %v783 = vpack.c.b16 %v773, %v772
      %v784 = vpack.c.b16 %v775, %v774
      %v785 = vpack.c.b16 %v777, %v776
      %794 = vmatpush.bf16.msra.mxu0 %v785
      %795 = vmatpush.bf16.msra.mxu0 %v784
      %796 = vmatpush.bf16.msra.mxu0 %v783
      %797 = vmatpush.bf16.msra.mxu0 %v782
      %798 = vmatpush.bf16.msra.mxu0 %v781
      %799 = vmatpush.bf16.msra.mxu0 %v780
      %800 = vmatpush.bf16.msra.mxu0 %v779
      %801 = vmatpush.bf16.msra.mxu0 %v778
      %802 = vmatmul.bf16.gmra.mxu0 %v716
      %v803 = vpop.f32.mrf.mxu0
      %v804 = vadd.f32 %v744, %v803
      %v805 = vpop.f32.mrf.mxu0
      %v806 = vadd.f32 %v744, %v805
      %807 = vmatmul.bf16.gmra.mxu0 %v717
      %v808 = vpop.f32.mrf.mxu0
      %v809 = vadd.f32 %v744, %v808
      %v810 = vpop.f32.mrf.mxu0
      %v811 = vadd.f32 %v744, %v810
      %812 = vmatmul.bf16.gmra.mxu0 %v718
      %v813 = vpop.f32.mrf.mxu0
      %v814 = vadd.f32 %v744, %v813
      %v815 = vpop.f32.mrf.mxu0
      %v816 = vadd.f32 %v744, %v815
      %817 = vmatmul.bf16.gmra.mxu0 %v719
      %v818 = vpop.f32.mrf.mxu0
      %v819 = vadd.f32 %v744, %v818
      %v820 = vpop.f32.mrf.mxu0
      %v821 = vadd.f32 %v744, %v820
      %822 = vmatmul.bf16.gmra.mxu0 %v720
      %v823 = vpop.f32.mrf.mxu0
      %v824 = vadd.f32 %v744, %v823
      %v825 = vpop.f32.mrf.mxu0
      %v826 = vadd.f32 %v744, %v825
      %827 = vmatmul.bf16.gmra.mxu0 %v721
      %v828 = vpop.f32.mrf.mxu0
      %v829 = vadd.f32 %v744, %v828
      %v830 = vpop.f32.mrf.mxu0
      %v831 = vadd.f32 %v744, %v830
      %832 = vmatmul.bf16.gmra.mxu0 %v722
      %v833 = vpop.f32.mrf.mxu0
      %v834 = vadd.f32 %v744, %v833
      %v835 = vpop.f32.mrf.mxu0
      %v836 = vadd.f32 %v744, %v835
      %837 = vmatmul.bf16.gmra.mxu0 %v723
      %v838 = vpop.f32.mrf.mxu0
      %v839 = vadd.f32 %v744, %v838
      %v840 = vpop.f32.mrf.mxu0
      %v841 = vadd.f32 %v744, %v840
      %842 = vdwg.mxu0
      %v843 = vmax.f32 %v804, 0.0
      %v844 = vmax.f32 %v806, 0.0
      %v845 = vmax.f32 %v809, 0.0
      %v846 = vmax.f32 %v811, 0.0
      %v847 = vmax.f32 %v814, 0.0
      %v848 = vmax.f32 %v816, 0.0
      %v849 = vmax.f32 %v819, 0.0
      %v850 = vmax.f32 %v821, 0.0
      %v851 = vmax.f32 %v824, 0.0
      %v852 = vmax.f32 %v826, 0.0
      %v853 = vmax.f32 %v829, 0.0
      %v854 = vmax.f32 %v831, 0.0
      %v855 = vmax.f32 %v834, 0.0
      %v856 = vmax.f32 %v836, 0.0
      %v857 = vmax.f32 %v839, 0.0
      %v858 = vmax.f32 %v841, 0.0
      %v859 = vpack.c.bf16 %v844, %v843
      %v860 = vpack.c.bf16 %v846, %v845
      %v861 = vpack.c.bf16 %v848, %v847
      %v862 = vpack.c.bf16 %v850, %v849
      %v863 = vpack.c.bf16 %v852, %v851
      %v864 = vpack.c.bf16 %v854, %v853
      %v865 = vpack.c.bf16 %v856, %v855
      %v866 = vpack.c.bf16 %v858, %v857
      %s867 = scalar_lea.vmem %s4, 64
      %v868 = vld [vmem:[%s867] sm:$0xf]
      %v869 = vld [vmem:[%s867 + $0x4] sm:$0xf]
      %v870 = vld [vmem:[%s867 + $0x8] sm:$0xf]
      %v871 = vld [vmem:[%s867 + $0xc] sm:$0xf]
      %v872 = vld [vmem:[%s867 + $0x10] sm:$0xf]
      %v873 = vld [vmem:[%s867 + $0x14] sm:$0xf]
      %v874 = vld [vmem:[%s867 + $0x18] sm:$0xf]
      %v875 = vld [vmem:[%s867 + $0x1c] sm:$0xf]
      %v876 = vld [vmem:[%s867 + $0x20] sm:$0xf]
      %v877 = vld [vmem:[%s867 + $0x24] sm:$0xf]
      %v878 = vld [vmem:[%s867 + $0x28] sm:$0xf]
      %v879 = vld [vmem:[%s867 + $0x2c] sm:$0xf]
      %v880 = vld [vmem:[%s867 + $0x30] sm:$0xf]
      %v881 = vld [vmem:[%s867 + $0x34] sm:$0xf]
      %v882 = vld [vmem:[%s867 + $0x38] sm:$0xf]
      %v883 = vld [vmem:[%s867 + $0x3c] sm:$0xf]
      %s884 = scalar_lea.vmem %s5, 1
      %v885 = vld [vmem:[%s884] sm:$0x1]
      %v887 = vperm.slane %v885, 0
      %v905 = vunpack.c.l.b16 %v868
      %v906 = vunpack.c.l.b16 %v869
      %v907 = vunpack.c.l.b16 %v870
      %v908 = vunpack.c.l.b16 %v871
      %v909 = vunpack.c.l.b16 %v872
      %v910 = vunpack.c.l.b16 %v873
      %v911 = vunpack.c.l.b16 %v874
      %v912 = vunpack.c.l.b16 %v875
      %v913 = vunpack.c.l.b16 %v876
      %v914 = vunpack.c.l.b16 %v877
      %v915 = vunpack.c.l.b16 %v878
      %v916 = vunpack.c.l.b16 %v879
      %v917 = vunpack.c.l.b16 %v880
      %v918 = vunpack.c.l.b16 %v881
      %v919 = vunpack.c.l.b16 %v882
      %v920 = vunpack.c.l.b16 %v883
      %v921 = vpack.c.b16 %v906, %v905
      %v922 = vpack.c.b16 %v908, %v907
      %v923 = vpack.c.b16 %v910, %v909
      %v924 = vpack.c.b16 %v912, %v911
      %v925 = vpack.c.b16 %v914, %v913
      %v926 = vpack.c.b16 %v916, %v915
      %v927 = vpack.c.b16 %v918, %v917
      %v928 = vpack.c.b16 %v920, %v919
      %937 = vmatpush.bf16.msra.mxu0 %v928
      %938 = vmatpush.bf16.msra.mxu0 %v927
      %939 = vmatpush.bf16.msra.mxu0 %v926
      %940 = vmatpush.bf16.msra.mxu0 %v925
      %941 = vmatpush.bf16.msra.mxu0 %v924
      %942 = vmatpush.bf16.msra.mxu0 %v923
      %943 = vmatpush.bf16.msra.mxu0 %v922
      %944 = vmatpush.bf16.msra.mxu0 %v921
      %945 = vmatmul.bf16.gmra.mxu0 %v859
      %v946 = vpop.f32.mrf.mxu0
      %v947 = vadd.f32 %v887, %v946
      %v948 = vpop.f32.mrf.mxu0
      %v949 = vadd.f32 %v887, %v948
      %950 = vmatmul.bf16.gmra.mxu0 %v860
      %v951 = vpop.f32.mrf.mxu0
      %v952 = vadd.f32 %v887, %v951
      %v953 = vpop.f32.mrf.mxu0
      %v954 = vadd.f32 %v887, %v953
      %955 = vmatmul.bf16.gmra.mxu0 %v861
      %v956 = vpop.f32.mrf.mxu0
      %v957 = vadd.f32 %v887, %v956
      %v958 = vpop.f32.mrf.mxu0
      %v959 = vadd.f32 %v887, %v958
      %960 = vmatmul.bf16.gmra.mxu0 %v862
      %v961 = vpop.f32.mrf.mxu0
      %v962 = vadd.f32 %v887, %v961
      %v963 = vpop.f32.mrf.mxu0
      %v964 = vadd.f32 %v887, %v963
      %965 = vmatmul.bf16.gmra.mxu0 %v863
      %v966 = vpop.f32.mrf.mxu0
      %v967 = vadd.f32 %v887, %v966
      %v968 = vpop.f32.mrf.mxu0
      %v969 = vadd.f32 %v887, %v968
      %970 = vmatmul.bf16.gmra.mxu0 %v864
      %v971 = vpop.f32.mrf.mxu0
      %v972 = vadd.f32 %v887, %v971
      %v973 = vpop.f32.mrf.mxu0
      %v974 = vadd.f32 %v887, %v973
      %975 = vmatmul.bf16.gmra.mxu0 %v865
      %v976 = vpop.f32.mrf.mxu0
      %v977 = vadd.f32 %v887, %v976
      %v978 = vpop.f32.mrf.mxu0
      %v979 = vadd.f32 %v887, %v978
      %980 = vmatmul.bf16.gmra.mxu0 %v866
      %v981 = vpop.f32.mrf.mxu0
      %v982 = vadd.f32 %v887, %v981
      %v983 = vpop.f32.mrf.mxu0
      %v984 = vadd.f32 %v887, %v983
      %985 = vdwg.mxu0
      %v986 = vmax.f32 %v947, 0.0
      %v987 = vmax.f32 %v949, 0.0
      %v988 = vmax.f32 %v952, 0.0
      %v989 = vmax.f32 %v954, 0.0
      %v990 = vmax.f32 %v957, 0.0
      %v991 = vmax.f32 %v959, 0.0
      %v992 = vmax.f32 %v962, 0.0
      %v993 = vmax.f32 %v964, 0.0
      %v994 = vmax.f32 %v967, 0.0
      %v995 = vmax.f32 %v969, 0.0
      %v996 = vmax.f32 %v972, 0.0
      %v997 = vmax.f32 %v974, 0.0
      %v998 = vmax.f32 %v977, 0.0
      %v999 = vmax.f32 %v979, 0.0
      %v1000 = vmax.f32 %v982, 0.0
      %v1001 = vmax.f32 %v984, 0.0
      %1002 = vmatpush.msra.mxu0 %v1001
      %1003 = vmatpush.msra.mxu0 %v1000
      %1004 = vmatpush.msra.mxu0 %v999
      %1005 = vmatpush.msra.mxu0 %v998
      %1006 = vmatpush.msra.mxu0 %v997
      %1007 = vmatpush.msra.mxu0 %v996
      %1008 = vmatpush.msra.mxu0 %v995
      %1009 = vmatpush.msra.mxu0 %v994
      %1010 = vmatpush.msra.mxu0 %v993
      %1011 = vmatpush.msra.mxu0 %v992
      %1012 = vmatpush.msra.mxu0 %v991
      %1013 = vmatpush.msra.mxu0 %v990
      %1014 = vmatpush.msra.mxu0 %v989
      %1015 = vmatpush.msra.mxu0 %v988
      %1016 = vmatpush.msra.mxu0 %v987
      %1017 = vmatpush.msra.mxu0 %v986
      %1018 = vmatmul.f32.gmra.mxu0 %v272
      %v1019 = vpop.f32.mrf.mxu0
      %v1020 = vadd.f32 0.0, %v1019
      %1021 = vmatmul.f32.gmra.mxu0 %v273
      %v1022 = vpop.f32.mrf.mxu0
      %v1023 = vadd.f32 0.0, %v1022
      %1024 = vmatmul.f32.gmra.mxu0 %v274
      %v1025 = vpop.f32.mrf.mxu0
      %v1026 = vadd.f32 0.0, %v1025
      %1027 = vmatmul.f32.gmra.mxu0 %v275
      %v1028 = vpop.f32.mrf.mxu0
      %v1029 = vadd.f32 0.0, %v1028
      %1030 = vmatmul.f32.gmra.mxu0 %v276
      %v1031 = vpop.f32.mrf.mxu0
      %v1032 = vadd.f32 0.0, %v1031
      %1033 = vmatmul.f32.gmra.mxu0 %v277
      %v1034 = vpop.f32.mrf.mxu0
      %v1035 = vadd.f32 0.0, %v1034
      %1036 = vmatmul.f32.gmra.mxu0 %v278
      %v1037 = vpop.f32.mrf.mxu0
      %v1038 = vadd.f32 0.0, %v1037
      %1039 = vmatmul.f32.gmra.mxu0 %v279
      %v1040 = vpop.f32.mrf.mxu0
      %v1041 = vadd.f32 0.0, %v1040
      %1042 = vmatmul.f32.gmra.mxu0 %v280
      %v1043 = vpop.f32.mrf.mxu0
      %v1044 = vadd.f32 0.0, %v1043
      %1045 = vmatmul.f32.gmra.mxu0 %v281
      %v1046 = vpop.f32.mrf.mxu0
      %v1047 = vadd.f32 0.0, %v1046
      %1048 = vmatmul.f32.gmra.mxu0 %v282
      %v1049 = vpop.f32.mrf.mxu0
      %v1050 = vadd.f32 0.0, %v1049
      %1051 = vmatmul.f32.gmra.mxu0 %v283
      %v1052 = vpop.f32.mrf.mxu0
      %v1053 = vadd.f32 0.0, %v1052
      %1054 = vmatmul.f32.gmra.mxu0 %v284
      %v1055 = vpop.f32.mrf.mxu0
      %v1056 = vadd.f32 0.0, %v1055
      %1057 = vmatmul.f32.gmra.mxu0 %v285
      %v1058 = vpop.f32.mrf.mxu0
      %v1059 = vadd.f32 0.0, %v1058
      %1060 = vmatmul.f32.gmra.mxu0 %v286
      %v1061 = vpop.f32.mrf.mxu0
      %v1062 = vadd.f32 0.0, %v1061
      %1063 = vmatmul.f32.gmra.mxu0 %v287
      %v1064 = vpop.f32.mrf.mxu0
      %v1065 = vadd.f32 0.0, %v1064
      %1066 = vdwg.mxu0
      %v1067 = vpack.c.bf16 %v1023, %v1020
      %v1068 = vpack.c.bf16 %v1029, %v1026
      %v1069 = vpack.c.bf16 %v1035, %v1032
      %v1070 = vpack.c.bf16 %v1041, %v1038
      %v1071 = vpack.c.bf16 %v1047, %v1044
      %v1072 = vpack.c.bf16 %v1053, %v1050
      %v1073 = vpack.c.bf16 %v1059, %v1056
      %v1074 = vpack.c.bf16 %v1065, %v1062
      %s1075 = scalar_lea.vmem %s2, 128
      %v1076 = vld [vmem:[%s1075] sm:$0xf]
      %v1077 = vld [vmem:[%s1075 + $0x4] sm:$0xf]
      %v1078 = vld [vmem:[%s1075 + $0x8] sm:$0xf]
      %v1079 = vld [vmem:[%s1075 + $0xc] sm:$0xf]
      %v1080 = vld [vmem:[%s1075 + $0x10] sm:$0xf]
      %v1081 = vld [vmem:[%s1075 + $0x14] sm:$0xf]
      %v1082 = vld [vmem:[%s1075 + $0x18] sm:$0xf]
      %v1083 = vld [vmem:[%s1075 + $0x1c] sm:$0xf]
      %v1084 = vld [vmem:[%s1075 + $0x20] sm:$0xf]
      %v1085 = vld [vmem:[%s1075 + $0x24] sm:$0xf]
      %v1086 = vld [vmem:[%s1075 + $0x28] sm:$0xf]
      %v1087 = vld [vmem:[%s1075 + $0x2c] sm:$0xf]
      %v1088 = vld [vmem:[%s1075 + $0x30] sm:$0xf]
      %v1089 = vld [vmem:[%s1075 + $0x34] sm:$0xf]
      %v1090 = vld [vmem:[%s1075 + $0x38] sm:$0xf]
      %v1091 = vld [vmem:[%s1075 + $0x3c] sm:$0xf]
      %s1092 = scalar_lea.vmem %s3, 2
      %v1093 = vld [vmem:[%s1092] sm:$0x1]
      %v1095 = vperm.slane %v1093, 0
      %v1113 = vunpack.c.l.b16 %v1076
      %v1114 = vunpack.c.l.b16 %v1077
      %v1115 = vunpack.c.l.b16 %v1078
      %v1116 = vunpack.c.l.b16 %v1079
      %v1117 = vunpack.c.l.b16 %v1080
      %v1118 = vunpack.c.l.b16 %v1081
      %v1119 = vunpack.c.l.b16 %v1082
      %v1120 = vunpack.c.l.b16 %v1083
      %v1121 = vunpack.c.l.b16 %v1084
      %v1122 = vunpack.c.l.b16 %v1085
      %v1123 = vunpack.c.l.b16 %v1086
      %v1124 = vunpack.c.l.b16 %v1087
      %v1125 = vunpack.c.l.b16 %v1088
      %v1126 = vunpack.c.l.b16 %v1089
      %v1127 = vunpack.c.l.b16 %v1090
      %v1128 = vunpack.c.l.b16 %v1091
      %v1129 = vpack.c.b16 %v1114, %v1113
      %v1130 = vpack.c.b16 %v1116, %v1115
      %v1131 = vpack.c.b16 %v1118, %v1117
      %v1132 = vpack.c.b16 %v1120, %v1119
      %v1133 = vpack.c.b16 %v1122, %v1121
      %v1134 = vpack.c.b16 %v1124, %v1123
      %v1135 = vpack.c.b16 %v1126, %v1125
      %v1136 = vpack.c.b16 %v1128, %v1127
      %1145 = vmatpush.bf16.msra.mxu0 %v1136
      %1146 = vmatpush.bf16.msra.mxu0 %v1135
      %1147 = vmatpush.bf16.msra.mxu0 %v1134
      %1148 = vmatpush.bf16.msra.mxu0 %v1133
      %1149 = vmatpush.bf16.msra.mxu0 %v1132
      %1150 = vmatpush.bf16.msra.mxu0 %v1131
      %1151 = vmatpush.bf16.msra.mxu0 %v1130
      %1152 = vmatpush.bf16.msra.mxu0 %v1129
      %1153 = vmatmul.bf16.gmra.mxu0 %v1067
      %v1154 = vpop.f32.mrf.mxu0
      %v1155 = vadd.f32 %v1095, %v1154
      %v1156 = vpop.f32.mrf.mxu0
      %v1157 = vadd.f32 %v1095, %v1156
      %1158 = vmatmul.bf16.gmra.mxu0 %v1068
      %v1159 = vpop.f32.mrf.mxu0
      %v1160 = vadd.f32 %v1095, %v1159
      %v1161 = vpop.f32.mrf.mxu0
      %v1162 = vadd.f32 %v1095, %v1161
      %1163 = vmatmul.bf16.gmra.mxu0 %v1069
      %v1164 = vpop.f32.mrf.mxu0
      %v1165 = vadd.f32 %v1095, %v1164
      %v1166 = vpop.f32.mrf.mxu0
      %v1167 = vadd.f32 %v1095, %v1166
      %1168 = vmatmul.bf16.gmra.mxu0 %v1070
      %v1169 = vpop.f32.mrf.mxu0
      %v1170 = vadd.f32 %v1095, %v1169
      %v1171 = vpop.f32.mrf.mxu0
      %v1172 = vadd.f32 %v1095, %v1171
      %1173 = vmatmul.bf16.gmra.mxu0 %v1071
      %v1174 = vpop.f32.mrf.mxu0
      %v1175 = vadd.f32 %v1095, %v1174
      %v1176 = vpop.f32.mrf.mxu0
      %v1177 = vadd.f32 %v1095, %v1176
      %1178 = vmatmul.bf16.gmra.mxu0 %v1072
      %v1179 = vpop.f32.mrf.mxu0
      %v1180 = vadd.f32 %v1095, %v1179
      %v1181 = vpop.f32.mrf.mxu0
      %v1182 = vadd.f32 %v1095, %v1181
      %1183 = vmatmul.bf16.gmra.mxu0 %v1073
      %v1184 = vpop.f32.mrf.mxu0
      %v1185 = vadd.f32 %v1095, %v1184
      %v1186 = vpop.f32.mrf.mxu0
      %v1187 = vadd.f32 %v1095, %v1186
      %1188 = vmatmul.bf16.gmra.mxu0 %v1074
      %v1189 = vpop.f32.mrf.mxu0
      %v1190 = vadd.f32 %v1095, %v1189
      %v1191 = vpop.f32.mrf.mxu0
      %v1192 = vadd.f32 %v1095, %v1191
      %1193 = vdwg.mxu0
      %v1194 = vmax.f32 %v1155, 0.0
      %v1195 = vmax.f32 %v1157, 0.0
      %v1196 = vmax.f32 %v1160, 0.0
      %v1197 = vmax.f32 %v1162, 0.0
      %v1198 = vmax.f32 %v1165, 0.0
      %v1199 = vmax.f32 %v1167, 0.0
      %v1200 = vmax.f32 %v1170, 0.0
      %v1201 = vmax.f32 %v1172, 0.0
      %v1202 = vmax.f32 %v1175, 0.0
      %v1203 = vmax.f32 %v1177, 0.0
      %v1204 = vmax.f32 %v1180, 0.0
      %v1205 = vmax.f32 %v1182, 0.0
      %v1206 = vmax.f32 %v1185, 0.0
      %v1207 = vmax.f32 %v1187, 0.0
      %v1208 = vmax.f32 %v1190, 0.0
      %v1209 = vmax.f32 %v1192, 0.0
      %v1210 = vpack.c.bf16 %v1195, %v1194
      %v1211 = vpack.c.bf16 %v1197, %v1196
      %v1212 = vpack.c.bf16 %v1199, %v1198
      %v1213 = vpack.c.bf16 %v1201, %v1200
      %v1214 = vpack.c.bf16 %v1203, %v1202
      %v1215 = vpack.c.bf16 %v1205, %v1204
      %v1216 = vpack.c.bf16 %v1207, %v1206
      %v1217 = vpack.c.bf16 %v1209, %v1208
      %s1218 = scalar_lea.vmem %s4, 128
      %v1219 = vld [vmem:[%s1218] sm:$0xf]
      %v1220 = vld [vmem:[%s1218 + $0x4] sm:$0xf]
      %v1221 = vld [vmem:[%s1218 + $0x8] sm:$0xf]
      %v1222 = vld [vmem:[%s1218 + $0xc] sm:$0xf]
      %v1223 = vld [vmem:[%s1218 + $0x10] sm:$0xf]
      %v1224 = vld [vmem:[%s1218 + $0x14] sm:$0xf]
      %v1225 = vld [vmem:[%s1218 + $0x18] sm:$0xf]
      %v1226 = vld [vmem:[%s1218 + $0x1c] sm:$0xf]
      %v1227 = vld [vmem:[%s1218 + $0x20] sm:$0xf]
      %v1228 = vld [vmem:[%s1218 + $0x24] sm:$0xf]
      %v1229 = vld [vmem:[%s1218 + $0x28] sm:$0xf]
      %v1230 = vld [vmem:[%s1218 + $0x2c] sm:$0xf]
      %v1231 = vld [vmem:[%s1218 + $0x30] sm:$0xf]
      %v1232 = vld [vmem:[%s1218 + $0x34] sm:$0xf]
      %v1233 = vld [vmem:[%s1218 + $0x38] sm:$0xf]
      %v1234 = vld [vmem:[%s1218 + $0x3c] sm:$0xf]
      %s1235 = scalar_lea.vmem %s5, 2
      %v1236 = vld [vmem:[%s1235] sm:$0x1]
      %v1238 = vperm.slane %v1236, 0
      %v1256 = vunpack.c.l.b16 %v1219
      %v1257 = vunpack.c.l.b16 %v1220
      %v1258 = vunpack.c.l.b16 %v1221
      %v1259 = vunpack.c.l.b16 %v1222
      %v1260 = vunpack.c.l.b16 %v1223
      %v1261 = vunpack.c.l.b16 %v1224
      %v1262 = vunpack.c.l.b16 %v1225
      %v1263 = vunpack.c.l.b16 %v1226
      %v1264 = vunpack.c.l.b16 %v1227
      %v1265 = vunpack.c.l.b16 %v1228
      %v1266 = vunpack.c.l.b16 %v1229
      %v1267 = vunpack.c.l.b16 %v1230
      %v1268 = vunpack.c.l.b16 %v1231
      %v1269 = vunpack.c.l.b16 %v1232
      %v1270 = vunpack.c.l.b16 %v1233
      %v1271 = vunpack.c.l.b16 %v1234
      %v1272 = vpack.c.b16 %v1257, %v1256
      %v1273 = vpack.c.b16 %v1259, %v1258
      %v1274 = vpack.c.b16 %v1261, %v1260
      %v1275 = vpack.c.b16 %v1263, %v1262
      %v1276 = vpack.c.b16 %v1265, %v1264
      %v1277 = vpack.c.b16 %v1267, %v1266
      %v1278 = vpack.c.b16 %v1269, %v1268
      %v1279 = vpack.c.b16 %v1271, %v1270
      %1288 = vmatpush.bf16.msra.mxu0 %v1279
      %1289 = vmatpush.bf16.msra.mxu0 %v1278
      %1290 = vmatpush.bf16.msra.mxu0 %v1277
      %1291 = vmatpush.bf16.msra.mxu0 %v1276
      %1292 = vmatpush.bf16.msra.mxu0 %v1275
      %1293 = vmatpush.bf16.msra.mxu0 %v1274
      %1294 = vmatpush.bf16.msra.mxu0 %v1273
      %1295 = vmatpush.bf16.msra.mxu0 %v1272
      %1296 = vmatmul.bf16.gmra.mxu0 %v1210
      %v1297 = vpop.f32.mrf.mxu0
      %v1298 = vadd.f32 %v1238, %v1297
      %v1299 = vpop.f32.mrf.mxu0
      %v1300 = vadd.f32 %v1238, %v1299
      %1301 = vmatmul.bf16.gmra.mxu0 %v1211
      %v1302 = vpop.f32.mrf.mxu0
      %v1303 = vadd.f32 %v1238, %v1302
      %v1304 = vpop.f32.mrf.mxu0
      %v1305 = vadd.f32 %v1238, %v1304
      %1306 = vmatmul.bf16.gmra.mxu0 %v1212
      %v1307 = vpop.f32.mrf.mxu0
      %v1308 = vadd.f32 %v1238, %v1307
      %v1309 = vpop.f32.mrf.mxu0
      %v1310 = vadd.f32 %v1238, %v1309
      %1311 = vmatmul.bf16.gmra.mxu0 %v1213
      %v1312 = vpop.f32.mrf.mxu0
      %v1313 = vadd.f32 %v1238, %v1312
      %v1314 = vpop.f32.mrf.mxu0
      %v1315 = vadd.f32 %v1238, %v1314
      %1316 = vmatmul.bf16.gmra.mxu0 %v1214
      %v1317 = vpop.f32.mrf.mxu0
      %v1318 = vadd.f32 %v1238, %v1317
      %v1319 = vpop.f32.mrf.mxu0
      %v1320 = vadd.f32 %v1238, %v1319
      %1321 = vmatmul.bf16.gmra.mxu0 %v1215
      %v1322 = vpop.f32.mrf.mxu0
      %v1323 = vadd.f32 %v1238, %v1322
      %v1324 = vpop.f32.mrf.mxu0
      %v1325 = vadd.f32 %v1238, %v1324
      %1326 = vmatmul.bf16.gmra.mxu0 %v1216
      %v1327 = vpop.f32.mrf.mxu0
      %v1328 = vadd.f32 %v1238, %v1327
      %v1329 = vpop.f32.mrf.mxu0
      %v1330 = vadd.f32 %v1238, %v1329
      %1331 = vmatmul.bf16.gmra.mxu0 %v1217
      %v1332 = vpop.f32.mrf.mxu0
      %v1333 = vadd.f32 %v1238, %v1332
      %v1334 = vpop.f32.mrf.mxu0
      %v1335 = vadd.f32 %v1238, %v1334
      %1336 = vdwg.mxu0
      %v1337 = vmax.f32 %v1298, 0.0
      %v1338 = vmax.f32 %v1300, 0.0
      %v1339 = vmax.f32 %v1303, 0.0
      %v1340 = vmax.f32 %v1305, 0.0
      %v1341 = vmax.f32 %v1308, 0.0
      %v1342 = vmax.f32 %v1310, 0.0
      %v1343 = vmax.f32 %v1313, 0.0
      %v1344 = vmax.f32 %v1315, 0.0
      %v1345 = vmax.f32 %v1318, 0.0
      %v1346 = vmax.f32 %v1320, 0.0
      %v1347 = vmax.f32 %v1323, 0.0
      %v1348 = vmax.f32 %v1325, 0.0
      %v1349 = vmax.f32 %v1328, 0.0
      %v1350 = vmax.f32 %v1330, 0.0
      %v1351 = vmax.f32 %v1333, 0.0
      %v1352 = vmax.f32 %v1335, 0.0
      %1353 = vmatpush.msra.mxu0 %v1352
      %1354 = vmatpush.msra.mxu0 %v1351
      %1355 = vmatpush.msra.mxu0 %v1350
      %1356 = vmatpush.msra.mxu0 %v1349
      %1357 = vmatpush.msra.mxu0 %v1348
      %1358 = vmatpush.msra.mxu0 %v1347
      %1359 = vmatpush.msra.mxu0 %v1346
      %1360 = vmatpush.msra.mxu0 %v1345
      %1361 = vmatpush.msra.mxu0 %v1344
      %1362 = vmatpush.msra.mxu0 %v1343
      %1363 = vmatpush.msra.mxu0 %v1342
      %1364 = vmatpush.msra.mxu0 %v1341
      %1365 = vmatpush.msra.mxu0 %v1340
      %1366 = vmatpush.msra.mxu0 %v1339
      %1367 = vmatpush.msra.mxu0 %v1338
      %1368 = vmatpush.msra.mxu0 %v1337
      %1369 = vmatmul.f32.gmra.mxu0 %v272
      %v1370 = vpop.f32.mrf.mxu0
      %v1371 = vadd.f32 0.0, %v1370
      %1372 = vmatmul.f32.gmra.mxu0 %v273
      %v1373 = vpop.f32.mrf.mxu0
      %v1374 = vadd.f32 0.0, %v1373
      %1375 = vmatmul.f32.gmra.mxu0 %v274
      %v1376 = vpop.f32.mrf.mxu0
      %v1377 = vadd.f32 0.0, %v1376
      %1378 = vmatmul.f32.gmra.mxu0 %v275
      %v1379 = vpop.f32.mrf.mxu0
      %v1380 = vadd.f32 0.0, %v1379
      %1381 = vmatmul.f32.gmra.mxu0 %v276
      %v1382 = vpop.f32.mrf.mxu0
      %v1383 = vadd.f32 0.0, %v1382
      %1384 = vmatmul.f32.gmra.mxu0 %v277
      %v1385 = vpop.f32.mrf.mxu0
      %v1386 = vadd.f32 0.0, %v1385
      %1387 = vmatmul.f32.gmra.mxu0 %v278
      %v1388 = vpop.f32.mrf.mxu0
      %v1389 = vadd.f32 0.0, %v1388
      %1390 = vmatmul.f32.gmra.mxu0 %v279
      %v1391 = vpop.f32.mrf.mxu0
      %v1392 = vadd.f32 0.0, %v1391
      %1393 = vmatmul.f32.gmra.mxu0 %v280
      %v1394 = vpop.f32.mrf.mxu0
      %v1395 = vadd.f32 0.0, %v1394
      %1396 = vmatmul.f32.gmra.mxu0 %v281
      %v1397 = vpop.f32.mrf.mxu0
      %v1398 = vadd.f32 0.0, %v1397
      %1399 = vmatmul.f32.gmra.mxu0 %v282
      %v1400 = vpop.f32.mrf.mxu0
      %v1401 = vadd.f32 0.0, %v1400
      %1402 = vmatmul.f32.gmra.mxu0 %v283
      %v1403 = vpop.f32.mrf.mxu0
      %v1404 = vadd.f32 0.0, %v1403
      %1405 = vmatmul.f32.gmra.mxu0 %v284
      %v1406 = vpop.f32.mrf.mxu0
      %v1407 = vadd.f32 0.0, %v1406
      %1408 = vmatmul.f32.gmra.mxu0 %v285
      %v1409 = vpop.f32.mrf.mxu0
      %v1410 = vadd.f32 0.0, %v1409
      %1411 = vmatmul.f32.gmra.mxu0 %v286
      %v1412 = vpop.f32.mrf.mxu0
      %v1413 = vadd.f32 0.0, %v1412
      %1414 = vmatmul.f32.gmra.mxu0 %v287
      %v1415 = vpop.f32.mrf.mxu0
      %v1416 = vadd.f32 0.0, %v1415
      %1417 = vdwg.mxu0
      %v1418 = vpack.c.bf16 %v1374, %v1371
      %v1419 = vpack.c.bf16 %v1380, %v1377
      %v1420 = vpack.c.bf16 %v1386, %v1383
      %v1421 = vpack.c.bf16 %v1392, %v1389
      %v1422 = vpack.c.bf16 %v1398, %v1395
      %v1423 = vpack.c.bf16 %v1404, %v1401
      %v1424 = vpack.c.bf16 %v1410, %v1407
      %v1425 = vpack.c.bf16 %v1416, %v1413
      %s1426 = scalar_lea.vmem %s2, 192
      %v1427 = vld [vmem:[%s1426] sm:$0xf]
      %v1428 = vld [vmem:[%s1426 + $0x4] sm:$0xf]
      %v1429 = vld [vmem:[%s1426 + $0x8] sm:$0xf]
      %v1430 = vld [vmem:[%s1426 + $0xc] sm:$0xf]
      %v1431 = vld [vmem:[%s1426 + $0x10] sm:$0xf]
      %v1432 = vld [vmem:[%s1426 + $0x14] sm:$0xf]
      %v1433 = vld [vmem:[%s1426 + $0x18] sm:$0xf]
      %v1434 = vld [vmem:[%s1426 + $0x1c] sm:$0xf]
      %v1435 = vld [vmem:[%s1426 + $0x20] sm:$0xf]
      %v1436 = vld [vmem:[%s1426 + $0x24] sm:$0xf]
      %v1437 = vld [vmem:[%s1426 + $0x28] sm:$0xf]
      %v1438 = vld [vmem:[%s1426 + $0x2c] sm:$0xf]
      %v1439 = vld [vmem:[%s1426 + $0x30] sm:$0xf]
      %v1440 = vld [vmem:[%s1426 + $0x34] sm:$0xf]
      %v1441 = vld [vmem:[%s1426 + $0x38] sm:$0xf]
      %v1442 = vld [vmem:[%s1426 + $0x3c] sm:$0xf]
      %s1443 = scalar_lea.vmem %s3, 3
      %v1444 = vld [vmem:[%s1443] sm:$0x1]
      %v1446 = vperm.slane %v1444, 0
      %v1464 = vunpack.c.l.b16 %v1427
      %v1465 = vunpack.c.l.b16 %v1428
      %v1466 = vunpack.c.l.b16 %v1429
      %v1467 = vunpack.c.l.b16 %v1430
      %v1468 = vunpack.c.l.b16 %v1431
      %v1469 = vunpack.c.l.b16 %v1432
      %v1470 = vunpack.c.l.b16 %v1433
      %v1471 = vunpack.c.l.b16 %v1434
      %v1472 = vunpack.c.l.b16 %v1435
      %v1473 = vunpack.c.l.b16 %v1436
      %v1474 = vunpack.c.l.b16 %v1437
      %v1475 = vunpack.c.l.b16 %v1438
      %v1476 = vunpack.c.l.b16 %v1439
      %v1477 = vunpack.c.l.b16 %v1440
      %v1478 = vunpack.c.l.b16 %v1441
      %v1479 = vunpack.c.l.b16 %v1442
      %v1480 = vpack.c.b16 %v1465, %v1464
      %v1481 = vpack.c.b16 %v1467, %v1466
      %v1482 = vpack.c.b16 %v1469, %v1468
      %v1483 = vpack.c.b16 %v1471, %v1470
      %v1484 = vpack.c.b16 %v1473, %v1472
      %v1485 = vpack.c.b16 %v1475, %v1474
      %v1486 = vpack.c.b16 %v1477, %v1476
      %v1487 = vpack.c.b16 %v1479, %v1478
      %1496 = vmatpush.bf16.msra.mxu0 %v1487
      %1497 = vmatpush.bf16.msra.mxu0 %v1486
      %1498 = vmatpush.bf16.msra.mxu0 %v1485
      %1499 = vmatpush.bf16.msra.mxu0 %v1484
      %1500 = vmatpush.bf16.msra.mxu0 %v1483
      %1501 = vmatpush.bf16.msra.mxu0 %v1482
      %1502 = vmatpush.bf16.msra.mxu0 %v1481
      %1503 = vmatpush.bf16.msra.mxu0 %v1480
      %1504 = vmatmul.bf16.gmra.mxu0 %v1418
      %v1505 = vpop.f32.mrf.mxu0
      %v1506 = vadd.f32 %v1446, %v1505
      %v1507 = vpop.f32.mrf.mxu0
      %v1508 = vadd.f32 %v1446, %v1507
      %1509 = vmatmul.bf16.gmra.mxu0 %v1419
      %v1510 = vpop.f32.mrf.mxu0
      %v1511 = vadd.f32 %v1446, %v1510
      %v1512 = vpop.f32.mrf.mxu0
      %v1513 = vadd.f32 %v1446, %v1512
      %1514 = vmatmul.bf16.gmra.mxu0 %v1420
      %v1515 = vpop.f32.mrf.mxu0
      %v1516 = vadd.f32 %v1446, %v1515
      %v1517 = vpop.f32.mrf.mxu0
      %v1518 = vadd.f32 %v1446, %v1517
      %1519 = vmatmul.bf16.gmra.mxu0 %v1421
      %v1520 = vpop.f32.mrf.mxu0
      %v1521 = vadd.f32 %v1446, %v1520
      %v1522 = vpop.f32.mrf.mxu0
      %v1523 = vadd.f32 %v1446, %v1522
      %1524 = vmatmul.bf16.gmra.mxu0 %v1422
      %v1525 = vpop.f32.mrf.mxu0
      %v1526 = vadd.f32 %v1446, %v1525
      %v1527 = vpop.f32.mrf.mxu0
      %v1528 = vadd.f32 %v1446, %v1527
      %1529 = vmatmul.bf16.gmra.mxu0 %v1423
      %v1530 = vpop.f32.mrf.mxu0
      %v1531 = vadd.f32 %v1446, %v1530
      %v1532 = vpop.f32.mrf.mxu0
      %v1533 = vadd.f32 %v1446, %v1532
      %1534 = vmatmul.bf16.gmra.mxu0 %v1424
      %v1535 = vpop.f32.mrf.mxu0
      %v1536 = vadd.f32 %v1446, %v1535
      %v1537 = vpop.f32.mrf.mxu0
      %v1538 = vadd.f32 %v1446, %v1537
      %1539 = vmatmul.bf16.gmra.mxu0 %v1425
      %v1540 = vpop.f32.mrf.mxu0
      %v1541 = vadd.f32 %v1446, %v1540
      %v1542 = vpop.f32.mrf.mxu0
      %v1543 = vadd.f32 %v1446, %v1542
      %1544 = vdwg.mxu0
      %v1545 = vmax.f32 %v1506, 0.0
      %v1546 = vmax.f32 %v1508, 0.0
      %v1547 = vmax.f32 %v1511, 0.0
      %v1548 = vmax.f32 %v1513, 0.0
      %v1549 = vmax.f32 %v1516, 0.0
      %v1550 = vmax.f32 %v1518, 0.0
      %v1551 = vmax.f32 %v1521, 0.0
      %v1552 = vmax.f32 %v1523, 0.0
      %v1553 = vmax.f32 %v1526, 0.0
      %v1554 = vmax.f32 %v1528, 0.0
      %v1555 = vmax.f32 %v1531, 0.0
      %v1556 = vmax.f32 %v1533, 0.0
      %v1557 = vmax.f32 %v1536, 0.0
      %v1558 = vmax.f32 %v1538, 0.0
      %v1559 = vmax.f32 %v1541, 0.0
      %v1560 = vmax.f32 %v1543, 0.0
      %v1561 = vpack.c.bf16 %v1546, %v1545
      %v1562 = vpack.c.bf16 %v1548, %v1547
      %v1563 = vpack.c.bf16 %v1550, %v1549
      %v1564 = vpack.c.bf16 %v1552, %v1551
      %v1565 = vpack.c.bf16 %v1554, %v1553
      %v1566 = vpack.c.bf16 %v1556, %v1555
      %v1567 = vpack.c.bf16 %v1558, %v1557
      %v1568 = vpack.c.bf16 %v1560, %v1559
      %s1569 = scalar_lea.vmem %s4, 192
      %v1570 = vld [vmem:[%s1569] sm:$0xf]
      %v1571 = vld [vmem:[%s1569 + $0x4] sm:$0xf]
      %v1572 = vld [vmem:[%s1569 + $0x8] sm:$0xf]
      %v1573 = vld [vmem:[%s1569 + $0xc] sm:$0xf]
      %v1574 = vld [vmem:[%s1569 + $0x10] sm:$0xf]
      %v1575 = vld [vmem:[%s1569 + $0x14] sm:$0xf]
      %v1576 = vld [vmem:[%s1569 + $0x18] sm:$0xf]
      %v1577 = vld [vmem:[%s1569 + $0x1c] sm:$0xf]
      %v1578 = vld [vmem:[%s1569 + $0x20] sm:$0xf]
      %v1579 = vld [vmem:[%s1569 + $0x24] sm:$0xf]
      %v1580 = vld [vmem:[%s1569 + $0x28] sm:$0xf]
      %v1581 = vld [vmem:[%s1569 + $0x2c] sm:$0xf]
      %v1582 = vld [vmem:[%s1569 + $0x30] sm:$0xf]
      %v1583 = vld [vmem:[%s1569 + $0x34] sm:$0xf]
      %v1584 = vld [vmem:[%s1569 + $0x38] sm:$0xf]
      %v1585 = vld [vmem:[%s1569 + $0x3c] sm:$0xf]
      %s1586 = scalar_lea.vmem %s5, 3
      %v1587 = vld [vmem:[%s1586] sm:$0x1]
      %v1589 = vperm.slane %v1587, 0
      %v1607 = vunpack.c.l.b16 %v1570
      %v1608 = vunpack.c.l.b16 %v1571
      %v1609 = vunpack.c.l.b16 %v1572
      %v1610 = vunpack.c.l.b16 %v1573
      %v1611 = vunpack.c.l.b16 %v1574
      %v1612 = vunpack.c.l.b16 %v1575
      %v1613 = vunpack.c.l.b16 %v1576
      %v1614 = vunpack.c.l.b16 %v1577
      %v1615 = vunpack.c.l.b16 %v1578
      %v1616 = vunpack.c.l.b16 %v1579
      %v1617 = vunpack.c.l.b16 %v1580
      %v1618 = vunpack.c.l.b16 %v1581
      %v1619 = vunpack.c.l.b16 %v1582
      %v1620 = vunpack.c.l.b16 %v1583
      %v1621 = vunpack.c.l.b16 %v1584
      %v1622 = vunpack.c.l.b16 %v1585
      %v1623 = vpack.c.b16 %v1608, %v1607
      %v1624 = vpack.c.b16 %v1610, %v1609
      %v1625 = vpack.c.b16 %v1612, %v1611
      %v1626 = vpack.c.b16 %v1614, %v1613
      %v1627 = vpack.c.b16 %v1616, %v1615
      %v1628 = vpack.c.b16 %v1618, %v1617
      %v1629 = vpack.c.b16 %v1620, %v1619
      %v1630 = vpack.c.b16 %v1622, %v1621
      %1639 = vmatpush.bf16.msra.mxu0 %v1630
      %1640 = vmatpush.bf16.msra.mxu0 %v1629
      %1641 = vmatpush.bf16.msra.mxu0 %v1628
      %1642 = vmatpush.bf16.msra.mxu0 %v1627
      %1643 = vmatpush.bf16.msra.mxu0 %v1626
      %1644 = vmatpush.bf16.msra.mxu0 %v1625
      %1645 = vmatpush.bf16.msra.mxu0 %v1624
      %1646 = vmatpush.bf16.msra.mxu0 %v1623
      %1647 = vmatmul.bf16.gmra.mxu0 %v1561
      %v1648 = vpop.f32.mrf.mxu0
      %v1649 = vadd.f32 %v1589, %v1648
      %v1650 = vpop.f32.mrf.mxu0
      %v1651 = vadd.f32 %v1589, %v1650
      %1652 = vmatmul.bf16.gmra.mxu0 %v1562
      %v1653 = vpop.f32.mrf.mxu0
      %v1654 = vadd.f32 %v1589, %v1653
      %v1655 = vpop.f32.mrf.mxu0
      %v1656 = vadd.f32 %v1589, %v1655
      %1657 = vmatmul.bf16.gmra.mxu0 %v1563
      %v1658 = vpop.f32.mrf.mxu0
      %v1659 = vadd.f32 %v1589, %v1658
      %v1660 = vpop.f32.mrf.mxu0
      %v1661 = vadd.f32 %v1589, %v1660
      %1662 = vmatmul.bf16.gmra.mxu0 %v1564
      %v1663 = vpop.f32.mrf.mxu0
      %v1664 = vadd.f32 %v1589, %v1663
      %v1665 = vpop.f32.mrf.mxu0
      %v1666 = vadd.f32 %v1589, %v1665
      %1667 = vmatmul.bf16.gmra.mxu0 %v1565
      %v1668 = vpop.f32.mrf.mxu0
      %v1669 = vadd.f32 %v1589, %v1668
      %v1670 = vpop.f32.mrf.mxu0
      %v1671 = vadd.f32 %v1589, %v1670
      %1672 = vmatmul.bf16.gmra.mxu0 %v1566
      %v1673 = vpop.f32.mrf.mxu0
      %v1674 = vadd.f32 %v1589, %v1673
      %v1675 = vpop.f32.mrf.mxu0
      %v1676 = vadd.f32 %v1589, %v1675
      %1677 = vmatmul.bf16.gmra.mxu0 %v1567
      %v1678 = vpop.f32.mrf.mxu0
      %v1679 = vadd.f32 %v1589, %v1678
      %v1680 = vpop.f32.mrf.mxu0
      %v1681 = vadd.f32 %v1589, %v1680
      %1682 = vmatmul.bf16.gmra.mxu0 %v1568
      %v1683 = vpop.f32.mrf.mxu0
      %v1684 = vadd.f32 %v1589, %v1683
      %v1685 = vpop.f32.mrf.mxu0
      %v1686 = vadd.f32 %v1589, %v1685
      %1687 = vdwg.mxu0
      %1688 = vst [vmem:[%s271] sm:$0xff] %v1649
      %1689 = vst [vmem:[%s271 + $0x8] sm:$0xff] %v1651
      %1690 = vst [vmem:[%s271 + $0x10] sm:$0xff] %v1654
      %1691 = vst [vmem:[%s271 + $0x18] sm:$0xff] %v1656
      %1692 = vst [vmem:[%s271 + $0x20] sm:$0xff] %v1659
      %1693 = vst [vmem:[%s271 + $0x28] sm:$0xff] %v1661
      %1694 = vst [vmem:[%s271 + $0x30] sm:$0xff] %v1664
      %1695 = vst [vmem:[%s271 + $0x38] sm:$0xff] %v1666
      %1696 = vst [vmem:[%s271 + $0x40] sm:$0xff] %v1669
      %1697 = vst [vmem:[%s271 + $0x48] sm:$0xff] %v1671
      %1698 = vst [vmem:[%s271 + $0x50] sm:$0xff] %v1674
      %1699 = vst [vmem:[%s271 + $0x58] sm:$0xff] %v1676
      %1700 = vst [vmem:[%s271 + $0x60] sm:$0xff] %v1679
      %1701 = vst [vmem:[%s271 + $0x68] sm:$0xff] %v1681
      %1702 = vst [vmem:[%s271 + $0x70] sm:$0xff] %v1684
      %1703 = vst [vmem:[%s271 + $0x78] sm:$0xff] %v1686
      %p1704 = scmp.lt.s32.totalorder %s17, 1
      %s1705 = scalar_select %p1704, %s17, 1
      %s1706 = smul.addr %s1705, 16
      %s1707 = smul.addr %s1706, 8
      %s1708 = scalar_lea.vmem %s6, %s1707
      // Predicated region
      $region45: #{forward_batched.1} parent=43 // pred_check
        %p1709 = pneg %p171
      $region46: #{forward_batched.1} parent=43 // pred_check_branch
        %1711 = sbr.rel (%p1709) target = $region48
      $region47: #{forward_batched.1} parent=43 // pred_region
        _
      $region48: #{forward_batched.1} parent=43 // pred_fallthru
        _
    $region44: #{forward_batched.1} parent=5 // pred_fallthru
      _
    %p1712 = scmp.le.s32.totalorder 2, %s12
    // Predicated region
    $region49: #{forward_batched.1} parent=5 // pred_check
      %p1713 = pneg %p1712
    $region50: #{forward_batched.1} parent=5 // pred_check_branch
      %1715 = sbr.rel (%p1713) target = $region52
    $region51: #{forward_batched.1} parent=5 // pred_region
      %s1716 = ssub.s32 %s12, 2
      // Predicated region
      $region53: #{forward_batched.1} parent=51 // pred_check
        %p1717 = pneg %p177
      $region54: #{forward_batched.1} parent=51 // pred_check_branch
        %1719 = sbr.rel (%p1717) target = $region56
      $region55: #{forward_batched.1} parent=51 // pred_region
        %p1720 = scmp.lt.s32.totalorder %s18, 1
        %s1721 = scalar_select %p1720, %s18, 1
        %s1722 = smul.addr %s1721, 16
        %s1723 = smul.addr %s1722, 8
        %s1724 = scalar_lea.vmem %s6, %s1723
      $region56: #{forward_batched.1} parent=51 // pred_fallthru
        _
    $region52: #{forward_batched.1} parent=5 // pred_fallthru
      _
  $region6: #{forward_batched.1} parent=0 // loop_footer
    %s16 = sadd.s32 1, %s12
  $region7: #{forward_batched.1} parent=0 // loop_footer_branch
    %11 = sbr.rel target = $region3
  $region8: #{forward_batched.1} parent=0 // loop_exit
    _

</llo_original>
